<compile_context>
chip_gen: v6e
topology: v6e:2x2x1
jax: 0.10.0
libtpu: 0.0.40
codegen_flags: <defaults>
</compile_context>

<pallas_src>
import functools

import jax
import jax.numpy as jnp
from jax import lax
from jax.experimental import pallas as pl
from jax.experimental.pallas import tpu as pltpu

EPS = 1e-5


def _round_up(v, m):
    return (v + m - 1) // m * m


def _plan_tiles(n, tile_n):
    """Pick (tile_n_lanes, padded_n).

    Lanes (batch) are tiled in 128-multiples.  We aim for tiles of ~tile_n but
    always use >=2 tiles when there is enough work (keeps both v7x TensorCores
    busy and lets the auto-pipeline overlap DMA with compute), and we balance
    tiles so padding waste stays below 128 columns per tile.  Tile size is
    capped at 16384 lanes so live intermediates + double-buffered input stay
    well inside v5e's default scoped-VMEM limit.
    """
    n128 = _round_up(max(int(n), 1), 128)
    tile_n = _round_up(min(max(int(tile_n), 128), 16384), 128)
    num_tiles = max(1, -(-n128 // tile_n))
    if num_tiles == 1 and n128 >= 256:
        num_tiles = 2  # megacore (v7x) + pipelining
    tn = _round_up(-(-n128 // num_tiles), 128)
    n_pad = tn * num_tiles
    return tn, n_pad


def _net_kernel(x_ref, w1_ref, b1_ref, w2_ref, b2_ref, w3_ref, b3_ref, o_ref):
    # x_ref: (21, TN) -- batch sits on the lane axis so tanh/relu and the
    # width-2 output store are lane-dense.  Widen (possibly bf16) input to f32
    # once; all math stays f32.
    x = x_ref[...].astype(jnp.float32)
    hi = lax.Precision.HIGHEST  # MXU has huge slack here; full-accuracy passes are free.

    # Linear(21,42) with folded BatchNorm affine, then tanh.     (42, TN)
    h = jnp.dot(w1_ref[...], x, precision=hi,
                preferred_element_type=jnp.float32) + b1_ref[...]
    h = jnp.tanh(h)

    # Linear(42,21) + tanh.                                      (21, TN)
    h = jnp.dot(w2_ref[...], h, precision=hi,
                preferred_element_type=jnp.float32) + b2_ref[...]
    h = jnp.tanh(h)

    # Linear(21,2) + relu.                                       (2, TN)
    h = jnp.dot(w3_ref[...], h, precision=hi,
                preferred_element_type=jnp.float32) + b3_ref[...]
    o_ref[...] = jnp.maximum(h, 0.0).astype(o_ref.dtype)


@functools.partial(jax.jit, static_argnames=("tile_n", "activation_dtype"))
def scoreoverunder_forward(x, params, *, tile_n=8192, activation_dtype=jnp.bfloat16):
    """Forward pass.  x: (N, 21); returns (N, 2) float32."""
    n, f = x.shape
    assert f == 21, f"expected 21 input features, got {f}"

    # ---- BatchNorm1d training-mode statistics, single fused read of x:
    # sum and sum-of-squares -> mean and biased variance.  Stats stay in f32
    # even when activations are streamed as bf16. ----
    xf = x.astype(jnp.float32)
    s1 = jnp.sum(xf, axis=0)                                # (21,)
    s2 = jnp.sum(xf * xf, axis=0)                           # (21,)
    mean = s1 / n
    var = jnp.maximum(s2 / n - mean * mean, 0.0)            # biased variance

    scale = params["gamma"].reshape(-1) * lax.rsqrt(var + EPS)
    shift = params["beta"].reshape(-1) - mean * scale

    # Fold BN affine into the first Linear:  y = (x*scale + shift) @ W1 + b1
    w1 = params["w1"]                                       # (21, 42)
    b1 = params["b1"].reshape(-1)                           # (42,)
    w1f = scale[:, None] * w1                               # (21, 42)
    b1f = jnp.dot(shift, w1, precision=lax.Precision.HIGHEST) + b1

    # Transposed (out_features, in_features) weights for the batch-on-lanes
    # dataflow; column biases broadcast over the lane (batch) axis.
    w1t = w1f.T                                             # (42, 21)
    w2t = params["w2"].T                                    # (21, 42)
    w3t = params["w3"].T                                    # (2, 21)
    b1c = b1f[:, None]                                      # (42, 1)
    b2c = params["b2"].reshape(-1)[:, None]                 # (21, 1)
    b3c = params["b3"].reshape(-1)[:, None]                 # (2, 1)

    # ---- Batch tiling (lane axis of the transposed activations). ----
    tn, n_pad = _plan_tiles(n, tile_n)

    # One producer expression: cast + transpose + pad (fuses into one copy in
    # XLA; streaming bf16 halves the kernel's dominant HBM read).
    x_t = jnp.pad(x.astype(activation_dtype).T, ((0, 0), (0, n_pad - n)))

    const = lambda i: (0, 0)
    out_t = pl.pallas_call(
        _net_kernel,
        out_shape=jax.ShapeDtypeStruct((2, n_pad), jnp.float32),
        grid=(n_pad // tn,),
        in_specs=[
            pl.BlockSpec((21, tn), lambda i: (0, i)),       # activations: streamed
            pl.BlockSpec((42, 21), const),                  # params: VMEM-resident
            pl.BlockSpec((42, 1), const),
            pl.BlockSpec((21, 42), const),
            pl.BlockSpec((21, 1), const),
            pl.BlockSpec((2, 21), const),
            pl.BlockSpec((2, 1), const),
        ],
        out_specs=pl.BlockSpec((2, tn), lambda i: (0, i)),
        compiler_params=pltpu.CompilerParams(
            dimension_semantics=("parallel",)),             # megacore-shard batch tiles
    )(x_t, w1t, b1c, w2t, b2c, w3t, b3c)

    return out_t[:, :n].T                                   # (N, 2)


def init_params(key):
    """Deterministic synthetic parameters matching the module's shapes."""
    ks = jax.random.split(key, 8)

    def lin(kw, kb, fan_in, fan_out):
        bound = 1.0 / jnp.sqrt(fan_in)
        w = jax.random.uniform(kw, (fan_in, fan_out), jnp.float32, -bound, bound)
        b = jax.random.uniform(kb, (1, fan_out), jnp.float32, -bound, bound)
        return w, b

    w1, b1 = lin(ks[0], ks[1], 21, 42)
    w2, b2 = lin(ks[2], ks[3], 42, 21)
    w3, b3 = lin(ks[4], ks[5], 21, 2)
    gamma = jnp.ones((1, 21), jnp.float32)   # BatchNorm1d default affine init
    beta = jnp.zeros((1, 21), jnp.float32)
    return dict(gamma=gamma, beta=beta, w1=w1, b1=b1, w2=w2, b2=b2, w3=w3, b3=b3)


def reference_forward(x, p):
    """Pure-JAX reference (training-mode BatchNorm1d, biased variance)."""
    x = x.astype(jnp.float32)
    hi = lax.Precision.HIGHEST
    mean = jnp.mean(x, axis=0, keepdims=True)
    var = jnp.mean((x - mean) ** 2, axis=0, keepdims=True)
    h = (x - mean) / jnp.sqrt(var + EPS) * p["gamma"] + p["beta"]
    h = jnp.tanh(jnp.dot(h, p["w1"], precision=hi) + p["b1"])
    h = jnp.tanh(jnp.dot(h, p["w2"], precision=hi) + p["b2"])
    h = jnp.dot(h, p["w3"], precision=hi) + p["b3"]
    return jnp.maximum(h, 0.0)


if __name__ == "__main__":
    key = jax.random.PRNGKey(0)
    kx, kp = jax.random.split(key)
    params = init_params(kp)

    # 1) Small batch, single tile, default bf16-activation fast path.
    N = 8
    x = jax.random.normal(kx, (N, 21), jnp.float32)
    out = jax.block_until_ready(scoreoverunder_forward(x, params))
    ref = reference_forward(x, params)
    assert out.shape == (N, 2)
    assert jnp.allclose(out, ref, atol=1e-2, rtol=1e-2), "mismatch vs reference (bf16 path)"

    # 2) Exact f32-activation path.
    out32 = jax.block_until_ready(
        scoreoverunder_forward(x, params, activation_dtype=jnp.float32))
    assert jnp.allclose(out32, ref, atol=1e-4, rtol=1e-4), "mismatch vs reference (f32 path)"

    # 3) Multi-tile grid + lane padding + output-slice path.
    N2 = 300
    x2 = jax.random.normal(jax.random.PRNGKey(1), (N2, 21), jnp.float32)
    out2 = jax.block_until_ready(scoreoverunder_forward(x2, params, tile_n=128))
    ref2 = reference_forward(x2, params)
    assert out2.shape == (N2, 2)
    assert jnp.allclose(out2, ref2, atol=1e-2, rtol=1e-2), "mismatch vs reference (tiled)"

    print("KERNEL_OK")
</pallas_src>

<mosaic_0001>
module attributes {stable_mosaic.version = 11 : i64} {
  func.func @_net_kernel(%arg0: i32, %arg1: memref<21x128xbf16, #tpu.memory_space<vmem>>, %arg2: memref<42x21xf32, #tpu.memory_space<vmem>>, %arg3: memref<42x1xf32, #tpu.memory_space<vmem>>, %arg4: memref<21x42xf32, #tpu.memory_space<vmem>>, %arg5: memref<21x1xf32, #tpu.memory_space<vmem>>, %arg6: memref<2x21xf32, #tpu.memory_space<vmem>>, %arg7: memref<2x1xf32, #tpu.memory_space<vmem>>, %arg8: memref<2x128xf32, #tpu.memory_space<vmem>>) attributes {dimension_semantics = [#tpu.dimension_semantics<parallel>], iteration_bounds = array<i64: 1>, scalar_prefetch = 0 : i64, scratch_operands = 0 : i64, tpu.core_type = #tpu.core_type<tc>, window_params = [{transform_indices = @transform_0, window_bounds = array<i64: 21, 128>}, {pipeline_mode = #tpu.pipeline_mode<synchronous>, transform_indices = @transform_1, window_bounds = array<i64: 42, 21>}, {pipeline_mode = #tpu.pipeline_mode<synchronous>, transform_indices = @transform_2, window_bounds = array<i64: 42, 1>}, {pipeline_mode = #tpu.pipeline_mode<synchronous>, transform_indices = @transform_3, window_bounds = array<i64: 21, 42>}, {pipeline_mode = #tpu.pipeline_mode<synchronous>, transform_indices = @transform_4, window_bounds = array<i64: 21, 1>}, {pipeline_mode = #tpu.pipeline_mode<synchronous>, transform_indices = @transform_5, window_bounds = array<i64: 2, 21>}, {pipeline_mode = #tpu.pipeline_mode<synchronous>, transform_indices = @transform_6, window_bounds = array<i64: 2, 1>}, {transform_indices = @transform_7, window_bounds = array<i64: 2, 128>}]} {
    %c0 = arith.constant 0 : index
    %c0_0 = arith.constant 0 : index
    %0 = vector.load %arg1[%c0, %c0_0] : memref<21x128xbf16, #tpu.memory_space<vmem>>, vector<21x128xbf16>
    %1 = arith.extf %0 : vector<21x128xbf16> to vector<21x128xf32>
    %c0_1 = arith.constant 0 : index
    %c0_2 = arith.constant 0 : index
    %2 = vector.load %arg2[%c0_1, %c0_2] : memref<42x21xf32, #tpu.memory_space<vmem>>, vector<42x21xf32>
    %cst = arith.constant dense<0.000000e+00> : vector<42x128xf32>
    %3 = tpu.matmul %2, %1, %cst {dimension_numbers = #tpu.dot_dimension_numbers<[1], [0], [0], [1], [0, 0, 1, 1], [], []>, precision = #tpu.contract_precision<fp32>} : vector<42x21xf32>, vector<21x128xf32>, vector<42x128xf32> -> vector<42x128xf32>
    %c0_3 = arith.constant 0 : index
    %c0_4 = arith.constant 0 : index
    %4 = vector.load %arg3[%c0_3, %c0_4] : memref<42x1xf32, #tpu.memory_space<vmem>>, vector<42x1xf32>
    %5 = vector.broadcast %4 : vector<42x1xf32> to vector<42x128xf32>
    %6 = arith.addf %3, %5 : vector<42x128xf32>
    %7 = math.tanh %6 : vector<42x128xf32>
    %c0_5 = arith.constant 0 : index
    %c0_6 = arith.constant 0 : index
    %8 = vector.load %arg4[%c0_5, %c0_6] : memref<21x42xf32, #tpu.memory_space<vmem>>, vector<21x42xf32>
    %cst_7 = arith.constant dense<0.000000e+00> : vector<21x128xf32>
    %9 = tpu.matmul %8, %7, %cst_7 {dimension_numbers = #tpu.dot_dimension_numbers<[1], [0], [0], [1], [0, 0, 1, 1], [], []>, precision = #tpu.contract_precision<fp32>} : vector<21x42xf32>, vector<42x128xf32>, vector<21x128xf32> -> vector<21x128xf32>
    %c0_8 = arith.constant 0 : index
    %c0_9 = arith.constant 0 : index
    %10 = vector.load %arg5[%c0_8, %c0_9] : memref<21x1xf32, #tpu.memory_space<vmem>>, vector<21x1xf32>
    %11 = vector.broadcast %10 : vector<21x1xf32> to vector<21x128xf32>
    %12 = arith.addf %9, %11 : vector<21x128xf32>
    %13 = math.tanh %12 : vector<21x128xf32>
    %c0_10 = arith.constant 0 : index
    %c0_11 = arith.constant 0 : index
    %14 = vector.load %arg6[%c0_10, %c0_11] : memref<2x21xf32, #tpu.memory_space<vmem>>, vector<2x21xf32>
    %cst_12 = arith.constant dense<0.000000e+00> : vector<2x128xf32>
    %15 = tpu.matmul %14, %13, %cst_12 {dimension_numbers = #tpu.dot_dimension_numbers<[1], [0], [0], [1], [0, 0, 1, 1], [], []>, precision = #tpu.contract_precision<fp32>} : vector<2x21xf32>, vector<21x128xf32>, vector<2x128xf32> -> vector<2x128xf32>
    %c0_13 = arith.constant 0 : index
    %c0_14 = arith.constant 0 : index
    %16 = vector.load %arg7[%c0_13, %c0_14] : memref<2x1xf32, #tpu.memory_space<vmem>>, vector<2x1xf32>
    %17 = vector.broadcast %16 : vector<2x1xf32> to vector<2x128xf32>
    %18 = arith.addf %15, %17 : vector<2x128xf32>
    %cst_15 = arith.constant 0.000000e+00 : f32
    %19 = vector.broadcast %cst_15 : f32 to vector<2x128xf32>
    %20 = arith.maximumf %18, %19 : vector<2x128xf32>
    %c0_16 = arith.constant 0 : index
    %c0_17 = arith.constant 0 : index
    %21 = vector.load %arg8[%c0_16, %c0_17] : memref<2x128xf32, #tpu.memory_space<vmem>>, vector<2x128xf32>
    tpu.vector_store %arg8[%c0_16, %c0_17], %20 {strides = array<i32>} : memref<2x128xf32, #tpu.memory_space<vmem>>, vector<2x128xf32>,
    return
  }
  func.func @transform_0(%arg0: i32) -> (i32, i32) {
    %c0_i32 = arith.constant 0 : i32
    %c0_i32_0 = arith.constant 0 : i32
    return %c0_i32, %arg0 : i32, i32
  }
  func.func @transform_1(%arg0: i32) -> (i32, i32) {
    %c0_i32 = arith.constant 0 : i32
    %c0_i32_0 = arith.constant 0 : i32
    %c0_i32_1 = arith.constant 0 : i32
    return %c0_i32, %c0_i32_0 : i32, i32
  }
  func.func @transform_2(%arg0: i32) -> (i32, i32) {
    %c0_i32 = arith.constant 0 : i32
    %c0_i32_0 = arith.constant 0 : i32
    %c0_i32_1 = arith.constant 0 : i32
    return %c0_i32, %c0_i32_0 : i32, i32
  }
  func.func @transform_3(%arg0: i32) -> (i32, i32) {
    %c0_i32 = arith.constant 0 : i32
    %c0_i32_0 = arith.constant 0 : i32
    %c0_i32_1 = arith.constant 0 : i32
    return %c0_i32, %c0_i32_0 : i32, i32
  }
  func.func @transform_4(%arg0: i32) -> (i32, i32) {
    %c0_i32 = arith.constant 0 : i32
    %c0_i32_0 = arith.constant 0 : i32
    %c0_i32_1 = arith.constant 0 : i32
    return %c0_i32, %c0_i32_0 : i32, i32
  }
  func.func @transform_5(%arg0: i32) -> (i32, i32) {
    %c0_i32 = arith.constant 0 : i32
    %c0_i32_0 = arith.constant 0 : i32
    %c0_i32_1 = arith.constant 0 : i32
    return %c0_i32, %c0_i32_0 : i32, i32
  }
  func.func @transform_6(%arg0: i32) -> (i32, i32) {
    %c0_i32 = arith.constant 0 : i32
    %c0_i32_0 = arith.constant 0 : i32
    %c0_i32_1 = arith.constant 0 : i32
    return %c0_i32, %c0_i32_0 : i32, i32
  }
  func.func @transform_7(%arg0: i32) -> (i32, i32) {
    %c0_i32 = arith.constant 0 : i32
    %c0_i32_0 = arith.constant 0 : i32
    return %c0_i32, %arg0 : i32, i32
  }
}

</mosaic_0001>

<llo_original>
// kernel: scoreoverunder_forward.1
$region0: #{scoreoverunder_forward.1}
  #allocation0 [shape = 'u32[]', space=smem, size = 0x4, offset = 0x4, fixed_abs, tag = 'smem constant byte address 0x4 - core index']
  #allocation1 [shape = 'u32[144,128]{1,0:T(1,128)}', space=vmem, size = 0x12000, scoped, tag = 'internal scratch']
  %s0 = inlined_call_operand.vmem [shape: bf16[21,128], index: 0, kind: input, shape index: {}]
  %s1 = inlined_call_operand.vmem [shape: f32[42,21], index: 1, kind: input, shape index: {}]
  %s2 = inlined_call_operand.vmem [shape: f32[42,1], index: 2, kind: input, shape index: {}]
  %s3 = inlined_call_operand.vmem [shape: f32[21,42], index: 3, kind: input, shape index: {}]
  %s4 = inlined_call_operand.vmem [shape: f32[21,1], index: 4, kind: input, shape index: {}]
  %s5 = inlined_call_operand.vmem [shape: f32[2,21], index: 5, kind: input, shape index: {}]
  %s6 = inlined_call_operand.vmem [shape: f32[2,1], index: 6, kind: input, shape index: {}]
  %s7 = inlined_call_operand.vmem [shape: f32[2,128], index: 7, kind: output, shape index: {}]
  %s8 = sld [smem:[#allocation0]]
  $region38: #{scoreoverunder_forward.1} parent=0
    _
  %s10 = ssub.s32 1, %s8
  %s11 = scalar_select 0, %s10, %s8
  // Predicated region
  $region2: #{scoreoverunder_forward.1} parent=0 // pred_check
    _
  $region3: #{scoreoverunder_forward.1} parent=0 // pred_check_branch
    %13 = sbr.rel (0) target = $region5
  $region4: #{scoreoverunder_forward.1} parent=0 // pred_region
    _
  $region5: #{scoreoverunder_forward.1} parent=0 // pred_fallthru
    _
  // Predicated region
  $region6: #{scoreoverunder_forward.1} parent=0 // pred_check
    _
  $region7: #{scoreoverunder_forward.1} parent=0 // pred_check_branch
    %15 = sbr.rel (0) target = $region9
  $region8: #{scoreoverunder_forward.1} parent=0 // pred_region
    _
  $region9: #{scoreoverunder_forward.1} parent=0 // pred_fallthru
    _
  // Predicated region
  $region10: #{scoreoverunder_forward.1} parent=0 // pred_check
    _
  $region11: #{scoreoverunder_forward.1} parent=0 // pred_check_branch
    %17 = sbr.rel (0) target = $region13
  $region12: #{scoreoverunder_forward.1} parent=0 // pred_region
    _
  $region13: #{scoreoverunder_forward.1} parent=0 // pred_fallthru
    _
  // Predicated region
  $region14: #{scoreoverunder_forward.1} parent=0 // pred_check
    _
  $region15: #{scoreoverunder_forward.1} parent=0 // pred_check_branch
    %19 = sbr.rel (0) target = $region17
  $region16: #{scoreoverunder_forward.1} parent=0 // pred_region
    _
  $region17: #{scoreoverunder_forward.1} parent=0 // pred_fallthru
    _
  // Predicated region
  $region18: #{scoreoverunder_forward.1} parent=0 // pred_check
    _
  $region19: #{scoreoverunder_forward.1} parent=0 // pred_check_branch
    %21 = sbr.rel (0) target = $region21
  $region20: #{scoreoverunder_forward.1} parent=0 // pred_region
    _
  $region21: #{scoreoverunder_forward.1} parent=0 // pred_fallthru
    _
  // Predicated region
  $region22: #{scoreoverunder_forward.1} parent=0 // pred_check
    _
  $region23: #{scoreoverunder_forward.1} parent=0 // pred_check_branch
    %23 = sbr.rel (0) target = $region25
  $region24: #{scoreoverunder_forward.1} parent=0 // pred_region
    _
  $region25: #{scoreoverunder_forward.1} parent=0 // pred_fallthru
    _
  // Predicated region
  $region26: #{scoreoverunder_forward.1} parent=0 // pred_check
    _
  $region27: #{scoreoverunder_forward.1} parent=0 // pred_check_branch
    %25 = sbr.rel (0) target = $region29
  $region28: #{scoreoverunder_forward.1} parent=0 // pred_region
    _
  $region29: #{scoreoverunder_forward.1} parent=0 // pred_fallthru
    _
  %v26 = vld [vmem:[%s0] sm:$0xf]
  %v27 = vld [vmem:[%s0 + $0x4] sm:$0xf]
  %v28 = vld [vmem:[%s0 + $0x8] sm:$0x7]
  %v29 = vunpack.c.l.bf16 %v26
  %v30 = vunpack.c.l.bf16 %v27
  %v31 = vunpack.c.l.bf16 %v28
  %v32 = vld [vmem:[%s1] sm:$0xff]
  %v33 = vld [vmem:[%s1 + $0x8] sm:$0xff]
  %v34 = vld [vmem:[%s1 + $0x10] sm:$0xff]
  %v35 = vld [vmem:[%s1 + $0x18] sm:$0xff]
  %v36 = vld [vmem:[%s1 + $0x20] sm:$0xff]
  %v37 = vld [vmem:[%s1 + $0x28] sm:$0x3]
  %v38 = vld [vmem:[%s2] sm:$0xff]
  %v39 = vld [vmem:[%s2 + $0x8] sm:$0xff]
  %v40 = vld [vmem:[%s2 + $0x10] sm:$0xff]
  %v41 = vld [vmem:[%s2 + $0x18] sm:$0xff]
  %v42 = vld [vmem:[%s2 + $0x20] sm:$0xff]
  %v43 = vld [vmem:[%s2 + $0x28] sm:$0x3]
  %45 = vset.pattern.permute.xlu0 0
  %46 = vperm.xlu0 %45, %v38
  %v47 = vpop.permute.xlu0 %46
  %50 = vset.pattern.permute.xlu0 0
  %51 = vperm.xlu0 %50, %v39
  %v52 = vpop.permute.xlu0 %51
  %55 = vset.pattern.permute.xlu0 0
  %56 = vperm.xlu0 %55, %v40
  %v57 = vpop.permute.xlu0 %56
  %60 = vset.pattern.permute.xlu0 0
  %61 = vperm.xlu0 %60, %v41
  %v62 = vpop.permute.xlu0 %61
  %65 = vset.pattern.permute.xlu0 0
  %66 = vperm.xlu0 %65, %v42
  %v67 = vpop.permute.xlu0 %66
  %70 = vset.pattern.permute.xlu0 0
  %71 = vperm.xlu0 %70, %v43
  %v72 = vpop.permute.xlu0 %71
  %vm74 = vcmask 171008
  %v76 = vsel %vm74, %v32, 0
  %v79 = vsel %vm74, %v33, 0
  %v82 = vsel %vm74, %v34, 0
  %v85 = vsel %vm74, %v35, 0
  %v88 = vsel %vm74, %v36, 0
  %v91 = vsel %vm74, %v37, 0
  %vm93 = vcmask 1044480
  %v95 = vsel %vm93, %v31, 0
  %97 = vmatprep.subr.mxu0 0.0
  %98 = vmatpush1.msra.mxu0 0.0
  %99 = vmatprep.subr.mxu0 0.0
  %100 = vmatpush1.msra.mxu0 0.0
  %101 = vmatprep.subr.mxu0 0.0
  %102 = vmatpush1.msra.mxu0 0.0
  %103 = vmatprep.subr.mxu0 0.0
  %104 = vmatpush1.msra.mxu0 0.0
  %105 = vmatprep.subr.mxu0 0.0
  %106 = vmatpush1.msra.mxu0 0.0
  %107 = vmatprep.subr.mxu0 0.0
  %108 = vmatpush1.msra.mxu0 0.0
  %109 = vmatprep.subr.mxu0 0.0
  %110 = vmatpush1.msra.mxu0 0.0
  %111 = vmatprep.subr.mxu0 0.0
  %112 = vmatpush1.msra.mxu0 0.0
  %113 = vmatprep.subr.mxu0 0.0
  %114 = vmatpush1.msra.mxu0 0.0
  %115 = vmatprep.subr.mxu0 0.0
  %116 = vmatpush1.msra.mxu0 0.0
  %117 = vmatprep.subr.mxu0 0.0
  %118 = vmatpush1.msra.mxu0 0.0
  %119 = vmatprep.subr.mxu0 0.0
  %120 = vmatpush1.msra.mxu0 0.0
  %121 = vmatprep.subr.mxu0 0.0
  %122 = vmatpush1.msra.mxu0 0.0
  %123 = vmatprep.subr.mxu0 0.0
  %v124 = vand.u32 %v95, 4294901760
  %125 = vmatpush1.msra.mxu0 %v124
  %126 = vmatprep.subr.mxu0 0.0
  %127 = vmatpush1.msra.mxu0 %v30
  %128 = vmatprep.subr.mxu0 0.0
  %129 = vmatpush1.msra.mxu0 %v29
  %130 = vmatprep.subr.mxu0 0.0
  %131 = vmatpush2.msra.mxu0 0.0
  %132 = vmatprep.subr.mxu0 0.0
  %133 = vmatpush2.msra.mxu0 0.0
  %134 = vmatprep.subr.mxu0 0.0
  %135 = vmatpush2.msra.mxu0 0.0
  %136 = vmatprep.subr.mxu0 0.0
  %137 = vmatpush2.msra.mxu0 0.0
  %138 = vmatprep.subr.mxu0 0.0
  %139 = vmatpush2.msra.mxu0 0.0
  %140 = vmatprep.subr.mxu0 0.0
  %141 = vmatpush2.msra.mxu0 0.0
  %142 = vmatprep.subr.mxu0 0.0
  %143 = vmatpush2.msra.mxu0 0.0
  %144 = vmatprep.subr.mxu0 0.0
  %145 = vmatpush2.msra.mxu0 0.0
  %146 = vmatprep.subr.mxu0 0.0
  %147 = vmatpush2.msra.mxu0 0.0
  %148 = vmatprep.subr.mxu0 0.0
  %149 = vmatpush2.msra.mxu0 0.0
  %150 = vmatprep.subr.mxu0 0.0
  %151 = vmatpush2.msra.mxu0 0.0
  %152 = vmatprep.subr.mxu0 0.0
  %153 = vmatpush2.msra.mxu0 0.0
  %154 = vmatprep.subr.mxu0 0.0
  %155 = vmatpush2.msra.mxu0 0.0
  %156 = vmatprep.subr.mxu0 0.0
  %157 = vmatpush2.msra.mxu0 0.0
  %158 = vmatprep.subr.mxu0 0.0
  %159 = vmatpush2.msra.mxu0 0.0
  %160 = vmatprep.subr.mxu0 0.0
  %161 = vmatpush2.msra.mxu0 0.0
  %162 = vmatprep.mubr.f32.mxu0 0.0
  %v163 = vand.u32 %v76, 4294901760
  %v164 = vsub.f32 %v76, %v163
  %v165 = vand.u32 %v164, 4294901760
  %v166 = vsub.f32 %v164, %v165
  %v167 = vand.u32 %v166, 4294901760
  %168 = vmatmul.mubr.f32.gmra.mxu0 %v167
  %v169 = vpop.f32.mrf.mxu0
  %v170 = vadd.f32 %v47, %v169
  %v171 = vpop.f32.mrf.mxu0
  %172 = vmatprep.mubr.f32.mxu0 0.0
  %v173 = vand.u32 %v79, 4294901760
  %v174 = vsub.f32 %v79, %v173
  %v175 = vand.u32 %v174, 4294901760
  %v176 = vsub.f32 %v174, %v175
  %v177 = vand.u32 %v176, 4294901760
  %178 = vmatmul.mubr.f32.gmra.mxu0 %v177
  %v179 = vpop.f32.mrf.mxu0
  %v180 = vadd.f32 %v52, %v179
  %v181 = vpop.f32.mrf.mxu0
  %182 = vmatprep.mubr.f32.mxu0 0.0
  %v183 = vand.u32 %v82, 4294901760
  %v184 = vsub.f32 %v82, %v183
  %v185 = vand.u32 %v184, 4294901760
  %v186 = vsub.f32 %v184, %v185
  %v187 = vand.u32 %v186, 4294901760
  %188 = vmatmul.mubr.f32.gmra.mxu0 %v187
  %v189 = vpop.f32.mrf.mxu0
  %v190 = vadd.f32 %v57, %v189
  %v191 = vpop.f32.mrf.mxu0
  %192 = vmatprep.mubr.f32.mxu0 0.0
  %v193 = vand.u32 %v85, 4294901760
  %v194 = vsub.f32 %v85, %v193
  %v195 = vand.u32 %v194, 4294901760
  %v196 = vsub.f32 %v194, %v195
  %v197 = vand.u32 %v196, 4294901760
  %198 = vmatmul.mubr.f32.gmra.mxu0 %v197
  %v199 = vpop.f32.mrf.mxu0
  %v200 = vadd.f32 %v62, %v199
  %v201 = vpop.f32.mrf.mxu0
  %202 = vmatprep.mubr.f32.mxu0 0.0
  %v203 = vand.u32 %v88, 4294901760
  %v204 = vsub.f32 %v88, %v203
  %v205 = vand.u32 %v204, 4294901760
  %v206 = vsub.f32 %v204, %v205
  %v207 = vand.u32 %v206, 4294901760
  %208 = vmatmul.mubr.f32.gmra.mxu0 %v207
  %v209 = vpop.f32.mrf.mxu0
  %v210 = vadd.f32 %v67, %v209
  %v211 = vpop.f32.mrf.mxu0
  %212 = vmatprep.mubr.f32.mxu0 0.0
  %v213 = vand.u32 %v91, 4294901760
  %v214 = vsub.f32 %v91, %v213
  %v215 = vand.u32 %v214, 4294901760
  %v216 = vsub.f32 %v214, %v215
  %v217 = vand.u32 %v216, 4294901760
  %218 = vmatmul.mubr.f32.gmra.mxu0 %v217
  %v219 = vpop.f32.mrf.mxu0
  %v220 = vadd.f32 %v72, %v219
  %v221 = vpop.f32.mrf.mxu0
  %222 = vdwg.mxu0
  %223 = vmatprep.subr.mxu0 0.0
  %224 = vmatpush1.msra.mxu0 0.0
  %225 = vmatprep.subr.mxu0 0.0
  %226 = vmatpush1.msra.mxu0 0.0
  %227 = vmatprep.subr.mxu0 0.0
  %228 = vmatpush1.msra.mxu0 0.0
  %229 = vmatprep.subr.mxu0 0.0
  %230 = vmatpush1.msra.mxu0 0.0
  %231 = vmatprep.subr.mxu0 0.0
  %232 = vmatpush1.msra.mxu0 0.0
  %233 = vmatprep.subr.mxu0 0.0
  %234 = vmatpush1.msra.mxu0 0.0
  %235 = vmatprep.subr.mxu0 0.0
  %236 = vmatpush1.msra.mxu0 0.0
  %237 = vmatprep.subr.mxu0 0.0
  %238 = vmatpush1.msra.mxu0 0.0
  %239 = vmatprep.subr.mxu0 0.0
  %240 = vmatpush1.msra.mxu0 0.0
  %241 = vmatprep.subr.mxu0 0.0
  %242 = vmatpush1.msra.mxu0 0.0
  %243 = vmatprep.subr.mxu0 0.0
  %244 = vmatpush1.msra.mxu0 0.0
  %245 = vmatprep.subr.mxu0 0.0
  %246 = vmatpush1.msra.mxu0 0.0
  %247 = vmatprep.subr.mxu0 0.0
  %248 = vmatpush1.msra.mxu0 0.0
  %249 = vmatprep.subr.mxu0 0.0
  %v250 = vand.u32 %v95, 4294901760
  %v251 = vsub.f32 %v95, %v250
  %v252 = vand.u32 %v251, 4294901760
  %v253 = vsub.f32 %v251, %v252
  %v254 = vand.u32 %v253, 4294901760
  %255 = vmatpush1.msra.mxu0 %v254
  %256 = vmatprep.subr.mxu0 0.0
  %v257 = vsub.f32 %v30, %v30
  %v258 = vand.u32 %v257, 4294901760
  %v259 = vsub.f32 %v257, %v258
  %v260 = vand.u32 %v259, 4294901760
  %261 = vmatpush1.msra.mxu0 %v260
  %262 = vmatprep.subr.mxu0 0.0
  %v263 = vsub.f32 %v29, %v29
  %v264 = vand.u32 %v263, 4294901760
  %v265 = vsub.f32 %v263, %v264
  %v266 = vand.u32 %v265, 4294901760
  %267 = vmatpush1.msra.mxu0 %v266
  %268 = vmatprep.subr.mxu0 0.0
  %269 = vmatpush2.msra.mxu0 0.0
  %270 = vmatprep.subr.mxu0 0.0
  %271 = vmatpush2.msra.mxu0 0.0
  %272 = vmatprep.subr.mxu0 0.0
  %273 = vmatpush2.msra.mxu0 0.0
  %274 = vmatprep.subr.mxu0 0.0
  %275 = vmatpush2.msra.mxu0 0.0
  %276 = vmatprep.subr.mxu0 0.0
  %277 = vmatpush2.msra.mxu0 0.0
  %278 = vmatprep.subr.mxu0 0.0
  %279 = vmatpush2.msra.mxu0 0.0
  %280 = vmatprep.subr.mxu0 0.0
  %281 = vmatpush2.msra.mxu0 0.0
  %282 = vmatprep.subr.mxu0 0.0
  %283 = vmatpush2.msra.mxu0 0.0
  %284 = vmatprep.subr.mxu0 0.0
  %285 = vmatpush2.msra.mxu0 0.0
  %286 = vmatprep.subr.mxu0 0.0
  %287 = vmatpush2.msra.mxu0 0.0
  %288 = vmatprep.subr.mxu0 0.0
  %289 = vmatpush2.msra.mxu0 0.0
  %290 = vmatprep.subr.mxu0 0.0
  %291 = vmatpush2.msra.mxu0 0.0
  %292 = vmatprep.subr.mxu0 0.0
  %293 = vmatpush2.msra.mxu0 0.0
  %294 = vmatprep.subr.mxu0 0.0
  %295 = vmatpush2.msra.mxu0 0.0
  %296 = vmatprep.subr.mxu0 0.0
  %297 = vmatpush2.msra.mxu0 0.0
  %298 = vmatprep.subr.mxu0 0.0
  %299 = vmatpush2.msra.mxu0 0.0
  %300 = vmatprep.mubr.f32.mxu0 0.0
  %v301 = vand.u32 %v76, 4294901760
  %302 = vmatmul.mubr.f32.gmra.mxu0 %v301
  %v303 = vpop.f32.mrf.mxu0
  %v304 = vadd.f32 %v170, %v303
  %v305 = vpop.f32.mrf.mxu0
  %306 = vmatprep.mubr.f32.mxu0 0.0
  %v307 = vand.u32 %v79, 4294901760
  %308 = vmatmul.mubr.f32.gmra.mxu0 %v307
  %v309 = vpop.f32.mrf.mxu0
  %v310 = vadd.f32 %v180, %v309
  %v311 = vpop.f32.mrf.mxu0
  %312 = vmatprep.mubr.f32.mxu0 0.0
  %v313 = vand.u32 %v82, 4294901760
  %314 = vmatmul.mubr.f32.gmra.mxu0 %v313
  %v315 = vpop.f32.mrf.mxu0
  %v316 = vadd.f32 %v190, %v315
  %v317 = vpop.f32.mrf.mxu0
  %318 = vmatprep.mubr.f32.mxu0 0.0
  %v319 = vand.u32 %v85, 4294901760
  %320 = vmatmul.mubr.f32.gmra.mxu0 %v319
  %v321 = vpop.f32.mrf.mxu0
  %v322 = vadd.f32 %v200, %v321
  %v323 = vpop.f32.mrf.mxu0
  %324 = vmatprep.mubr.f32.mxu0 0.0
  %v325 = vand.u32 %v88, 4294901760
  %326 = vmatmul.mubr.f32.gmra.mxu0 %v325
  %v327 = vpop.f32.mrf.mxu0
  %v328 = vadd.f32 %v210, %v327
  %v329 = vpop.f32.mrf.mxu0
  %330 = vmatprep.mubr.f32.mxu0 0.0
  %v331 = vand.u32 %v91, 4294901760
  %332 = vmatmul.mubr.f32.gmra.mxu0 %v331
  %v333 = vpop.f32.mrf.mxu0
  %v334 = vadd.f32 %v220, %v333
  %v335 = vpop.f32.mrf.mxu0
  %336 = vdwg.mxu0
  %337 = vmatprep.subr.mxu0 0.0
  %338 = vmatpush1.msra.mxu0 0.0
  %339 = vmatprep.subr.mxu0 0.0
  %340 = vmatpush1.msra.mxu0 0.0
  %341 = vmatprep.subr.mxu0 0.0
  %342 = vmatpush1.msra.mxu0 0.0
  %343 = vmatprep.subr.mxu0 0.0
  %344 = vmatpush1.msra.mxu0 0.0
  %345 = vmatprep.subr.mxu0 0.0
  %346 = vmatpush1.msra.mxu0 0.0
  %347 = vmatprep.subr.mxu0 0.0
  %348 = vmatpush1.msra.mxu0 0.0
  %349 = vmatprep.subr.mxu0 0.0
  %350 = vmatpush1.msra.mxu0 0.0
  %351 = vmatprep.subr.mxu0 0.0
  %352 = vmatpush1.msra.mxu0 0.0
  %353 = vmatprep.subr.mxu0 0.0
  %354 = vmatpush1.msra.mxu0 0.0
  %355 = vmatprep.subr.mxu0 0.0
  %356 = vmatpush1.msra.mxu0 0.0
  %357 = vmatprep.subr.mxu0 0.0
  %358 = vmatpush1.msra.mxu0 0.0
  %359 = vmatprep.subr.mxu0 0.0
  %360 = vmatpush1.msra.mxu0 0.0
  %361 = vmatprep.subr.mxu0 0.0
  %362 = vmatpush1.msra.mxu0 0.0
  %363 = vmatprep.subr.mxu0 0.0
  %v364 = vand.u32 %v95, 4294901760
  %v365 = vsub.f32 %v95, %v364
  %366 = vmatpush1.msra.mxu0 %v365
  %367 = vmatprep.subr.mxu0 0.0
  %v368 = vsub.f32 %v30, %v30
  %369 = vmatpush1.msra.mxu0 %v368
  %370 = vmatprep.subr.mxu0 0.0
  %v371 = vsub.f32 %v29, %v29
  %372 = vmatpush1.msra.mxu0 %v371
  %373 = vmatprep.subr.mxu0 0.0
  %374 = vmatpush2.msra.mxu0 0.0
  %375 = vmatprep.subr.mxu0 0.0
  %376 = vmatpush2.msra.mxu0 0.0
  %377 = vmatprep.subr.mxu0 0.0
  %378 = vmatpush2.msra.mxu0 0.0
  %379 = vmatprep.subr.mxu0 0.0
  %380 = vmatpush2.msra.mxu0 0.0
  %381 = vmatprep.subr.mxu0 0.0
  %382 = vmatpush2.msra.mxu0 0.0
  %383 = vmatprep.subr.mxu0 0.0
  %384 = vmatpush2.msra.mxu0 0.0
  %385 = vmatprep.subr.mxu0 0.0
  %386 = vmatpush2.msra.mxu0 0.0
  %387 = vmatprep.subr.mxu0 0.0
  %388 = vmatpush2.msra.mxu0 0.0
  %389 = vmatprep.subr.mxu0 0.0
  %390 = vmatpush2.msra.mxu0 0.0
  %391 = vmatprep.subr.mxu0 0.0
  %392 = vmatpush2.msra.mxu0 0.0
  %393 = vmatprep.subr.mxu0 0.0
  %394 = vmatpush2.msra.mxu0 0.0
  %395 = vmatprep.subr.mxu0 0.0
  %396 = vmatpush2.msra.mxu0 0.0
  %397 = vmatprep.subr.mxu0 0.0
  %398 = vmatpush2.msra.mxu0 0.0
  %399 = vmatprep.subr.mxu0 0.0
  %400 = vmatpush2.msra.mxu0 0.0
  %401 = vmatprep.subr.mxu0 0.0
  %402 = vmatpush2.msra.mxu0 0.0
  %403 = vmatprep.subr.mxu0 0.0
  %404 = vmatpush2.msra.mxu0 0.0
  %405 = vmatprep.mubr.f32.mxu0 0.0
  %v406 = vand.u32 %v76, 4294901760
  %v407 = vsub.f32 %v76, %v406
  %408 = vmatmul.mubr.f32.gmra.mxu0 %v407
  %v409 = vpop.f32.mrf.mxu0
  %v410 = vadd.f32 %v304, %v409
  %v411 = vpop.f32.mrf.mxu0
  %412 = vmatprep.mubr.f32.mxu0 0.0
  %v413 = vand.u32 %v79, 4294901760
  %v414 = vsub.f32 %v79, %v413
  %415 = vmatmul.mubr.f32.gmra.mxu0 %v414
  %v416 = vpop.f32.mrf.mxu0
  %v417 = vadd.f32 %v310, %v416
  %v418 = vpop.f32.mrf.mxu0
  %419 = vmatprep.mubr.f32.mxu0 0.0
  %v420 = vand.u32 %v82, 4294901760
  %v421 = vsub.f32 %v82, %v420
  %422 = vmatmul.mubr.f32.gmra.mxu0 %v421
  %v423 = vpop.f32.mrf.mxu0
  %v424 = vadd.f32 %v316, %v423
  %v425 = vpop.f32.mrf.mxu0
  %426 = vmatprep.mubr.f32.mxu0 0.0
  %v427 = vand.u32 %v85, 4294901760
  %v428 = vsub.f32 %v85, %v427
  %429 = vmatmul.mubr.f32.gmra.mxu0 %v428
  %v430 = vpop.f32.mrf.mxu0
  %v431 = vadd.f32 %v322, %v430
  %v432 = vpop.f32.mrf.mxu0
  %433 = vmatprep.mubr.f32.mxu0 0.0
  %v434 = vand.u32 %v88, 4294901760
  %v435 = vsub.f32 %v88, %v434
  %436 = vmatmul.mubr.f32.gmra.mxu0 %v435
  %v437 = vpop.f32.mrf.mxu0
  %v438 = vadd.f32 %v328, %v437
  %v439 = vpop.f32.mrf.mxu0
  %440 = vmatprep.mubr.f32.mxu0 0.0
  %v441 = vand.u32 %v91, 4294901760
  %v442 = vsub.f32 %v91, %v441
  %443 = vmatmul.mubr.f32.gmra.mxu0 %v442
  %v444 = vpop.f32.mrf.mxu0
  %v445 = vadd.f32 %v334, %v444
  %v446 = vpop.f32.mrf.mxu0
  %447 = vdwg.mxu0
  %448 = vmatprep.subr.mxu0 0.0
  %449 = vmatpush1.msra.mxu0 0.0
  %450 = vmatprep.subr.mxu0 0.0
  %451 = vmatpush1.msra.mxu0 0.0
  %452 = vmatprep.subr.mxu0 0.0
  %453 = vmatpush1.msra.mxu0 0.0
  %454 = vmatprep.subr.mxu0 0.0
  %455 = vmatpush1.msra.mxu0 0.0
  %456 = vmatprep.subr.mxu0 0.0
  %457 = vmatpush1.msra.mxu0 0.0
  %458 = vmatprep.subr.mxu0 0.0
  %459 = vmatpush1.msra.mxu0 0.0
  %460 = vmatprep.subr.mxu0 0.0
  %461 = vmatpush1.msra.mxu0 0.0
  %462 = vmatprep.subr.mxu0 0.0
  %463 = vmatpush1.msra.mxu0 0.0
  %464 = vmatprep.subr.mxu0 0.0
  %465 = vmatpush1.msra.mxu0 0.0
  %466 = vmatprep.subr.mxu0 0.0
  %467 = vmatpush1.msra.mxu0 0.0
  %468 = vmatprep.subr.mxu0 0.0
  %469 = vmatpush1.msra.mxu0 0.0
  %470 = vmatprep.subr.mxu0 0.0
  %471 = vmatpush1.msra.mxu0 0.0
  %472 = vmatprep.subr.mxu0 0.0
  %473 = vmatpush1.msra.mxu0 0.0
  %474 = vmatprep.subr.mxu0 0.0
  %v475 = vand.u32 %v95, 4294901760
  %476 = vmatpush1.msra.mxu0 %v475
  %477 = vmatprep.subr.mxu0 0.0
  %478 = vmatpush1.msra.mxu0 %v30
  %479 = vmatprep.subr.mxu0 0.0
  %480 = vmatpush1.msra.mxu0 %v29
  %481 = vmatprep.subr.mxu0 0.0
  %482 = vmatpush2.msra.mxu0 0.0
  %483 = vmatprep.subr.mxu0 0.0
  %484 = vmatpush2.msra.mxu0 0.0
  %485 = vmatprep.subr.mxu0 0.0
  %486 = vmatpush2.msra.mxu0 0.0
  %487 = vmatprep.subr.mxu0 0.0
  %488 = vmatpush2.msra.mxu0 0.0
  %489 = vmatprep.subr.mxu0 0.0
  %490 = vmatpush2.msra.mxu0 0.0
  %491 = vmatprep.subr.mxu0 0.0
  %492 = vmatpush2.msra.mxu0 0.0
  %493 = vmatprep.subr.mxu0 0.0
  %494 = vmatpush2.msra.mxu0 0.0
  %495 = vmatprep.subr.mxu0 0.0
  %496 = vmatpush2.msra.mxu0 0.0
  %497 = vmatprep.subr.mxu0 0.0
  %498 = vmatpush2.msra.mxu0 0.0
  %499 = vmatprep.subr.mxu0 0.0
  %500 = vmatpush2.msra.mxu0 0.0
  %501 = vmatprep.subr.mxu0 0.0
  %502 = vmatpush2.msra.mxu0 0.0
  %503 = vmatprep.subr.mxu0 0.0
  %504 = vmatpush2.msra.mxu0 0.0
  %505 = vmatprep.subr.mxu0 0.0
  %506 = vmatpush2.msra.mxu0 0.0
  %507 = vmatprep.subr.mxu0 0.0
  %508 = vmatpush2.msra.mxu0 0.0
  %509 = vmatprep.subr.mxu0 0.0
  %510 = vmatpush2.msra.mxu0 0.0
  %511 = vmatprep.subr.mxu0 0.0
  %512 = vmatpush2.msra.mxu0 0.0
  %513 = vmatprep.mubr.f32.mxu0 0.0
  %v514 = vand.u32 %v76, 4294901760
  %v515 = vsub.f32 %v76, %v514
  %v516 = vand.u32 %v515, 4294901760
  %517 = vmatmul.mubr.f32.gmra.mxu0 %v516
  %v518 = vpop.f32.mrf.mxu0
  %v519 = vadd.f32 %v410, %v518
  %v520 = vpop.f32.mrf.mxu0
  %521 = vmatprep.mubr.f32.mxu0 0.0
  %v522 = vand.u32 %v79, 4294901760
  %v523 = vsub.f32 %v79, %v522
  %v524 = vand.u32 %v523, 4294901760
  %525 = vmatmul.mubr.f32.gmra.mxu0 %v524
  %v526 = vpop.f32.mrf.mxu0
  %v527 = vadd.f32 %v417, %v526
  %v528 = vpop.f32.mrf.mxu0
  %529 = vmatprep.mubr.f32.mxu0 0.0
  %v530 = vand.u32 %v82, 4294901760
  %v531 = vsub.f32 %v82, %v530
  %v532 = vand.u32 %v531, 4294901760
  %533 = vmatmul.mubr.f32.gmra.mxu0 %v532
  %v534 = vpop.f32.mrf.mxu0
  %v535 = vadd.f32 %v424, %v534
  %v536 = vpop.f32.mrf.mxu0
  %537 = vmatprep.mubr.f32.mxu0 0.0
  %v538 = vand.u32 %v85, 4294901760
  %v539 = vsub.f32 %v85, %v538
  %v540 = vand.u32 %v539, 4294901760
  %541 = vmatmul.mubr.f32.gmra.mxu0 %v540
  %v542 = vpop.f32.mrf.mxu0
  %v543 = vadd.f32 %v431, %v542
  %v544 = vpop.f32.mrf.mxu0
  %545 = vmatprep.mubr.f32.mxu0 0.0
  %v546 = vand.u32 %v88, 4294901760
  %v547 = vsub.f32 %v88, %v546
  %v548 = vand.u32 %v547, 4294901760
  %549 = vmatmul.mubr.f32.gmra.mxu0 %v548
  %v550 = vpop.f32.mrf.mxu0
  %v551 = vadd.f32 %v438, %v550
  %v552 = vpop.f32.mrf.mxu0
  %553 = vmatprep.mubr.f32.mxu0 0.0
  %v554 = vand.u32 %v91, 4294901760
  %v555 = vsub.f32 %v91, %v554
  %v556 = vand.u32 %v555, 4294901760
  %557 = vmatmul.mubr.f32.gmra.mxu0 %v556
  %v558 = vpop.f32.mrf.mxu0
  %v559 = vadd.f32 %v445, %v558
  %v560 = vpop.f32.mrf.mxu0
  %561 = vdwg.mxu0
  %562 = vmatprep.subr.mxu0 0.0
  %563 = vmatpush1.msra.mxu0 0.0
  %564 = vmatprep.subr.mxu0 0.0
  %565 = vmatpush1.msra.mxu0 0.0
  %566 = vmatprep.subr.mxu0 0.0
  %567 = vmatpush1.msra.mxu0 0.0
  %568 = vmatprep.subr.mxu0 0.0
  %569 = vmatpush1.msra.mxu0 0.0
  %570 = vmatprep.subr.mxu0 0.0
  %571 = vmatpush1.msra.mxu0 0.0
  %572 = vmatprep.subr.mxu0 0.0
  %573 = vmatpush1.msra.mxu0 0.0
  %574 = vmatprep.subr.mxu0 0.0
  %575 = vmatpush1.msra.mxu0 0.0
  %576 = vmatprep.subr.mxu0 0.0
  %577 = vmatpush1.msra.mxu0 0.0
  %578 = vmatprep.subr.mxu0 0.0
  %579 = vmatpush1.msra.mxu0 0.0
  %580 = vmatprep.subr.mxu0 0.0
  %581 = vmatpush1.msra.mxu0 0.0
  %582 = vmatprep.subr.mxu0 0.0
  %583 = vmatpush1.msra.mxu0 0.0
  %584 = vmatprep.subr.mxu0 0.0
  %585 = vmatpush1.msra.mxu0 0.0
  %586 = vmatprep.subr.mxu0 0.0
  %587 = vmatpush1.msra.mxu0 0.0
  %588 = vmatprep.subr.mxu0 0.0
  %v589 = vand.u32 %v95, 4294901760
  %v590 = vsub.f32 %v95, %v589
  %v591 = vand.u32 %v590, 4294901760
  %592 = vmatpush1.msra.mxu0 %v591
  %593 = vmatprep.subr.mxu0 0.0
  %v594 = vsub.f32 %v30, %v30
  %v595 = vand.u32 %v594, 4294901760
  %596 = vmatpush1.msra.mxu0 %v595
  %597 = vmatprep.subr.mxu0 0.0
  %v598 = vsub.f32 %v29, %v29
  %v599 = vand.u32 %v598, 4294901760
  %600 = vmatpush1.msra.mxu0 %v599
  %601 = vmatprep.subr.mxu0 0.0
  %602 = vmatpush2.msra.mxu0 0.0
  %603 = vmatprep.subr.mxu0 0.0
  %604 = vmatpush2.msra.mxu0 0.0
  %605 = vmatprep.subr.mxu0 0.0
  %606 = vmatpush2.msra.mxu0 0.0
  %607 = vmatprep.subr.mxu0 0.0
  %608 = vmatpush2.msra.mxu0 0.0
  %609 = vmatprep.subr.mxu0 0.0
  %610 = vmatpush2.msra.mxu0 0.0
  %611 = vmatprep.subr.mxu0 0.0
  %612 = vmatpush2.msra.mxu0 0.0
  %613 = vmatprep.subr.mxu0 0.0
  %614 = vmatpush2.msra.mxu0 0.0
  %615 = vmatprep.subr.mxu0 0.0
  %616 = vmatpush2.msra.mxu0 0.0
  %617 = vmatprep.subr.mxu0 0.0
  %618 = vmatpush2.msra.mxu0 0.0
  %619 = vmatprep.subr.mxu0 0.0
  %620 = vmatpush2.msra.mxu0 0.0
  %621 = vmatprep.subr.mxu0 0.0
  %622 = vmatpush2.msra.mxu0 0.0
  %623 = vmatprep.subr.mxu0 0.0
  %624 = vmatpush2.msra.mxu0 0.0
  %625 = vmatprep.subr.mxu0 0.0
  %626 = vmatpush2.msra.mxu0 0.0
  %627 = vmatprep.subr.mxu0 0.0
  %628 = vmatpush2.msra.mxu0 0.0
  %629 = vmatprep.subr.mxu0 0.0
  %630 = vmatpush2.msra.mxu0 0.0
  %631 = vmatprep.subr.mxu0 0.0
  %632 = vmatpush2.msra.mxu0 0.0
  %633 = vmatprep.mubr.f32.mxu0 0.0
  %v634 = vand.u32 %v76, 4294901760
  %635 = vmatmul.mubr.f32.gmra.mxu0 %v634
  %v636 = vpop.f32.mrf.mxu0
  %v637 = vadd.f32 %v519, %v636
  %v638 = vpop.f32.mrf.mxu0
  %639 = vmatprep.mubr.f32.mxu0 0.0
  %v640 = vand.u32 %v79, 4294901760
  %641 = vmatmul.mubr.f32.gmra.mxu0 %v640
  %v642 = vpop.f32.mrf.mxu0
  %v643 = vadd.f32 %v527, %v642
  %v644 = vpop.f32.mrf.mxu0
  %645 = vmatprep.mubr.f32.mxu0 0.0
  %v646 = vand.u32 %v82, 4294901760
  %647 = vmatmul.mubr.f32.gmra.mxu0 %v646
  %v648 = vpop.f32.mrf.mxu0
  %v649 = vadd.f32 %v535, %v648
  %v650 = vpop.f32.mrf.mxu0
  %651 = vmatprep.mubr.f32.mxu0 0.0
  %v652 = vand.u32 %v85, 4294901760
  %653 = vmatmul.mubr.f32.gmra.mxu0 %v652
  %v654 = vpop.f32.mrf.mxu0
  %v655 = vadd.f32 %v543, %v654
  %v656 = vpop.f32.mrf.mxu0
  %657 = vmatprep.mubr.f32.mxu0 0.0
  %v658 = vand.u32 %v88, 4294901760
  %659 = vmatmul.mubr.f32.gmra.mxu0 %v658
  %v660 = vpop.f32.mrf.mxu0
  %v661 = vadd.f32 %v551, %v660
  %v662 = vpop.f32.mrf.mxu0
  %663 = vmatprep.mubr.f32.mxu0 0.0
  %v664 = vand.u32 %v91, 4294901760
  %665 = vmatmul.mubr.f32.gmra.mxu0 %v664
  %v666 = vpop.f32.mrf.mxu0
  %v667 = vadd.f32 %v559, %v666
  %v668 = vpop.f32.mrf.mxu0
  %669 = vdwg.mxu0
  %670 = vmatprep.subr.mxu0 0.0
  %671 = vmatpush1.msra.mxu0 0.0
  %672 = vmatprep.subr.mxu0 0.0
  %673 = vmatpush1.msra.mxu0 0.0
  %674 = vmatprep.subr.mxu0 0.0
  %675 = vmatpush1.msra.mxu0 0.0
  %676 = vmatprep.subr.mxu0 0.0
  %677 = vmatpush1.msra.mxu0 0.0
  %678 = vmatprep.subr.mxu0 0.0
  %679 = vmatpush1.msra.mxu0 0.0
  %680 = vmatprep.subr.mxu0 0.0
  %681 = vmatpush1.msra.mxu0 0.0
  %682 = vmatprep.subr.mxu0 0.0
  %683 = vmatpush1.msra.mxu0 0.0
  %684 = vmatprep.subr.mxu0 0.0
  %685 = vmatpush1.msra.mxu0 0.0
  %686 = vmatprep.subr.mxu0 0.0
  %687 = vmatpush1.msra.mxu0 0.0
  %688 = vmatprep.subr.mxu0 0.0
  %689 = vmatpush1.msra.mxu0 0.0
  %690 = vmatprep.subr.mxu0 0.0
  %691 = vmatpush1.msra.mxu0 0.0
  %692 = vmatprep.subr.mxu0 0.0
  %693 = vmatpush1.msra.mxu0 0.0
  %694 = vmatprep.subr.mxu0 0.0
  %695 = vmatpush1.msra.mxu0 0.0
  %696 = vmatprep.subr.mxu0 0.0
  %v697 = vand.u32 %v95, 4294901760
  %698 = vmatpush1.msra.mxu0 %v697
  %699 = vmatprep.subr.mxu0 0.0
  %700 = vmatpush1.msra.mxu0 %v30
  %701 = vmatprep.subr.mxu0 0.0
  %702 = vmatpush1.msra.mxu0 %v29
  %703 = vmatprep.subr.mxu0 0.0
  %704 = vmatpush2.msra.mxu0 0.0
  %705 = vmatprep.subr.mxu0 0.0
  %706 = vmatpush2.msra.mxu0 0.0
  %707 = vmatprep.subr.mxu0 0.0
  %708 = vmatpush2.msra.mxu0 0.0
  %709 = vmatprep.subr.mxu0 0.0
  %710 = vmatpush2.msra.mxu0 0.0
  %711 = vmatprep.subr.mxu0 0.0
  %712 = vmatpush2.msra.mxu0 0.0
  %713 = vmatprep.subr.mxu0 0.0
  %714 = vmatpush2.msra.mxu0 0.0
  %715 = vmatprep.subr.mxu0 0.0
  %716 = vmatpush2.msra.mxu0 0.0
  %717 = vmatprep.subr.mxu0 0.0
  %718 = vmatpush2.msra.mxu0 0.0
  %719 = vmatprep.subr.mxu0 0.0
  %720 = vmatpush2.msra.mxu0 0.0
  %721 = vmatprep.subr.mxu0 0.0
  %722 = vmatpush2.msra.mxu0 0.0
  %723 = vmatprep.subr.mxu0 0.0
  %724 = vmatpush2.msra.mxu0 0.0
  %725 = vmatprep.subr.mxu0 0.0
  %726 = vmatpush2.msra.mxu0 0.0
  %727 = vmatprep.subr.mxu0 0.0
  %728 = vmatpush2.msra.mxu0 0.0
  %729 = vmatprep.subr.mxu0 0.0
  %730 = vmatpush2.msra.mxu0 0.0
  %731 = vmatprep.subr.mxu0 0.0
  %732 = vmatpush2.msra.mxu0 0.0
  %733 = vmatprep.subr.mxu0 0.0
  %734 = vmatpush2.msra.mxu0 0.0
  %735 = vmatprep.mubr.f32.mxu0 0.0
  %v736 = vand.u32 %v76, 4294901760
  %737 = vmatmul.mubr.f32.gmra.mxu0 %v736
  %v738 = vpop.f32.mrf.mxu0
  %v739 = vadd.f32 %v637, %v738
  %v740 = vpop.f32.mrf.mxu0
  %741 = vmatprep.mubr.f32.mxu0 0.0
  %v742 = vand.u32 %v79, 4294901760
  %743 = vmatmul.mubr.f32.gmra.mxu0 %v742
  %v744 = vpop.f32.mrf.mxu0
  %v745 = vadd.f32 %v643, %v744
  %v746 = vpop.f32.mrf.mxu0
  %747 = vmatprep.mubr.f32.mxu0 0.0
  %v748 = vand.u32 %v82, 4294901760
  %749 = vmatmul.mubr.f32.gmra.mxu0 %v748
  %v750 = vpop.f32.mrf.mxu0
  %v751 = vadd.f32 %v649, %v750
  %v752 = vpop.f32.mrf.mxu0
  %753 = vmatprep.mubr.f32.mxu0 0.0
  %v754 = vand.u32 %v85, 4294901760
  %755 = vmatmul.mubr.f32.gmra.mxu0 %v754
  %v756 = vpop.f32.mrf.mxu0
  %v757 = vadd.f32 %v655, %v756
  %v758 = vpop.f32.mrf.mxu0
  %759 = vmatprep.mubr.f32.mxu0 0.0
  %v760 = vand.u32 %v88, 4294901760
  %761 = vmatmul.mubr.f32.gmra.mxu0 %v760
  %v762 = vpop.f32.mrf.mxu0
  %v763 = vadd.f32 %v661, %v762
  %v764 = vpop.f32.mrf.mxu0
  %765 = vmatprep.mubr.f32.mxu0 0.0
  %v766 = vand.u32 %v91, 4294901760
  %767 = vmatmul.mubr.f32.gmra.mxu0 %v766
  %v768 = vpop.f32.mrf.mxu0
  %v769 = vadd.f32 %v667, %v768
  %v770 = vpop.f32.mrf.mxu0
  %771 = vdwg.mxu0
  %v772 = vtanh.pop %v739
  %v773 = vtanh.pop %v745
  %v774 = vtanh.pop %v751
  %v775 = vtanh.pop %v757
  %v776 = vtanh.pop %v763
  %v777 = vtanh.pop %v769
  %v778 = vld [vmem:[%s3] sm:$0xff]
  %v779 = vld [vmem:[%s3 + $0x8] sm:$0xff]
  %v780 = vld [vmem:[%s3 + $0x10] sm:$0x1f]
  %v781 = vld [vmem:[%s4] sm:$0xff]
  %v782 = vld [vmem:[%s4 + $0x8] sm:$0xff]
  %v783 = vld [vmem:[%s4 + $0x10] sm:$0x1f]
  %785 = vset.pattern.permute.xlu0 0
  %786 = vperm.xlu0 %785, %v781
  %v787 = vpop.permute.xlu0 %786
  %790 = vset.pattern.permute.xlu0 0
  %791 = vperm.xlu0 %790, %v782
  %v792 = vpop.permute.xlu0 %791
  %795 = vset.pattern.permute.xlu0 0
  %796 = vperm.xlu0 %795, %v783
  %v797 = vpop.permute.xlu0 %796
  %vm799 = vcmask 343040
  %v801 = vsel %vm799, %v778, 0
  %v804 = vsel %vm799, %v779, 0
  %v807 = vsel %vm799, %v780, 0
  %vm809 = vcmask 1041408
  %v811 = vsel %vm809, %v777, 0
  %813 = vmatprep.subr.mxu0 0.0
  %814 = vmatpush1.msra.mxu0 0.0
  %815 = vmatprep.subr.mxu0 0.0
  %816 = vmatpush1.msra.mxu0 0.0
  %817 = vmatprep.subr.mxu0 0.0
  %818 = vmatpush1.msra.mxu0 0.0
  %819 = vmatprep.subr.mxu0 0.0
  %820 = vmatpush1.msra.mxu0 0.0
  %821 = vmatprep.subr.mxu0 0.0
  %822 = vmatpush1.msra.mxu0 0.0
  %823 = vmatprep.subr.mxu0 0.0
  %824 = vmatpush1.msra.mxu0 0.0
  %825 = vmatprep.subr.mxu0 0.0
  %826 = vmatpush1.msra.mxu0 0.0
  %827 = vmatprep.subr.mxu0 0.0
  %828 = vmatpush1.msra.mxu0 0.0
  %829 = vmatprep.subr.mxu0 0.0
  %830 = vmatpush1.msra.mxu0 0.0
  %831 = vmatprep.subr.mxu0 0.0
  %832 = vmatpush1.msra.mxu0 0.0
  %833 = vmatprep.subr.mxu0 0.0
  %v834 = vand.u32 %v811, 4294901760
  %835 = vmatpush1.msra.mxu0 %v834
  %836 = vmatprep.subr.mxu0 0.0
  %v837 = vand.u32 %v776, 4294901760
  %838 = vmatpush1.msra.mxu0 %v837
  %839 = vmatprep.subr.mxu0 0.0
  %v840 = vand.u32 %v775, 4294901760
  %841 = vmatpush1.msra.mxu0 %v840
  %842 = vmatprep.subr.mxu0 0.0
  %v843 = vand.u32 %v774, 4294901760
  %844 = vmatpush1.msra.mxu0 %v843
  %845 = vmatprep.subr.mxu0 0.0
  %v846 = vand.u32 %v773, 4294901760
  %847 = vmatpush1.msra.mxu0 %v846
  %848 = vmatprep.subr.mxu0 0.0
  %v849 = vand.u32 %v772, 4294901760
  %850 = vmatpush1.msra.mxu0 %v849
  %851 = vmatprep.subr.mxu0 0.0
  %852 = vmatpush2.msra.mxu0 0.0
  %853 = vmatprep.subr.mxu0 0.0
  %854 = vmatpush2.msra.mxu0 0.0
  %855 = vmatprep.subr.mxu0 0.0
  %856 = vmatpush2.msra.mxu0 0.0
  %857 = vmatprep.subr.mxu0 0.0
  %858 = vmatpush2.msra.mxu0 0.0
  %859 = vmatprep.subr.mxu0 0.0
  %860 = vmatpush2.msra.mxu0 0.0
  %861 = vmatprep.subr.mxu0 0.0
  %862 = vmatpush2.msra.mxu0 0.0
  %863 = vmatprep.subr.mxu0 0.0
  %864 = vmatpush2.msra.mxu0 0.0
  %865 = vmatprep.subr.mxu0 0.0
  %866 = vmatpush2.msra.mxu0 0.0
  %867 = vmatprep.subr.mxu0 0.0
  %868 = vmatpush2.msra.mxu0 0.0
  %869 = vmatprep.subr.mxu0 0.0
  %870 = vmatpush2.msra.mxu0 0.0
  %871 = vmatprep.subr.mxu0 0.0
  %872 = vmatpush2.msra.mxu0 0.0
  %873 = vmatprep.subr.mxu0 0.0
  %874 = vmatpush2.msra.mxu0 0.0
  %875 = vmatprep.subr.mxu0 0.0
  %876 = vmatpush2.msra.mxu0 0.0
  %877 = vmatprep.subr.mxu0 0.0
  %878 = vmatpush2.msra.mxu0 0.0
  %879 = vmatprep.subr.mxu0 0.0
  %880 = vmatpush2.msra.mxu0 0.0
  %881 = vmatprep.subr.mxu0 0.0
  %882 = vmatpush2.msra.mxu0 0.0
  %883 = vmatprep.mubr.f32.mxu0 0.0
  %v884 = vand.u32 %v801, 4294901760
  %v885 = vsub.f32 %v801, %v884
  %v886 = vand.u32 %v885, 4294901760
  %v887 = vsub.f32 %v885, %v886
  %v888 = vand.u32 %v887, 4294901760
  %889 = vmatmul.mubr.f32.gmra.mxu0 %v888
  %v890 = vpop.f32.mrf.mxu0
  %v891 = vadd.f32 %v787, %v890
  %v892 = vpop.f32.mrf.mxu0
  %893 = vmatprep.mubr.f32.mxu0 0.0
  %v894 = vand.u32 %v804, 4294901760
  %v895 = vsub.f32 %v804, %v894
  %v896 = vand.u32 %v895, 4294901760
  %v897 = vsub.f32 %v895, %v896
  %v898 = vand.u32 %v897, 4294901760
  %899 = vmatmul.mubr.f32.gmra.mxu0 %v898
  %v900 = vpop.f32.mrf.mxu0
  %v901 = vadd.f32 %v792, %v900
  %v902 = vpop.f32.mrf.mxu0
  %903 = vmatprep.mubr.f32.mxu0 0.0
  %v904 = vand.u32 %v807, 4294901760
  %v905 = vsub.f32 %v807, %v904
  %v906 = vand.u32 %v905, 4294901760
  %v907 = vsub.f32 %v905, %v906
  %v908 = vand.u32 %v907, 4294901760
  %909 = vmatmul.mubr.f32.gmra.mxu0 %v908
  %v910 = vpop.f32.mrf.mxu0
  %v911 = vadd.f32 %v797, %v910
  %v912 = vpop.f32.mrf.mxu0
  %913 = vdwg.mxu0
  %914 = vmatprep.subr.mxu0 0.0
  %915 = vmatpush1.msra.mxu0 0.0
  %916 = vmatprep.subr.mxu0 0.0
  %917 = vmatpush1.msra.mxu0 0.0
  %918 = vmatprep.subr.mxu0 0.0
  %919 = vmatpush1.msra.mxu0 0.0
  %920 = vmatprep.subr.mxu0 0.0
  %921 = vmatpush1.msra.mxu0 0.0
  %922 = vmatprep.subr.mxu0 0.0
  %923 = vmatpush1.msra.mxu0 0.0
  %924 = vmatprep.subr.mxu0 0.0
  %925 = vmatpush1.msra.mxu0 0.0
  %926 = vmatprep.subr.mxu0 0.0
  %927 = vmatpush1.msra.mxu0 0.0
  %928 = vmatprep.subr.mxu0 0.0
  %929 = vmatpush1.msra.mxu0 0.0
  %930 = vmatprep.subr.mxu0 0.0
  %931 = vmatpush1.msra.mxu0 0.0
  %932 = vmatprep.subr.mxu0 0.0
  %933 = vmatpush1.msra.mxu0 0.0
  %934 = vmatprep.subr.mxu0 0.0
  %v935 = vand.u32 %v811, 4294901760
  %v936 = vsub.f32 %v811, %v935
  %v937 = vand.u32 %v936, 4294901760
  %v938 = vsub.f32 %v936, %v937
  %v939 = vand.u32 %v938, 4294901760
  %940 = vmatpush1.msra.mxu0 %v939
  %941 = vmatprep.subr.mxu0 0.0
  %v942 = vand.u32 %v776, 4294901760
  %v943 = vsub.f32 %v776, %v942
  %v944 = vand.u32 %v943, 4294901760
  %v945 = vsub.f32 %v943, %v944
  %v946 = vand.u32 %v945, 4294901760
  %947 = vmatpush1.msra.mxu0 %v946
  %948 = vmatprep.subr.mxu0 0.0
  %v949 = vand.u32 %v775, 4294901760
  %v950 = vsub.f32 %v775, %v949
  %v951 = vand.u32 %v950, 4294901760
  %v952 = vsub.f32 %v950, %v951
  %v953 = vand.u32 %v952, 4294901760
  %954 = vmatpush1.msra.mxu0 %v953
  %955 = vmatprep.subr.mxu0 0.0
  %v956 = vand.u32 %v774, 4294901760
  %v957 = vsub.f32 %v774, %v956
  %v958 = vand.u32 %v957, 4294901760
  %v959 = vsub.f32 %v957, %v958
  %v960 = vand.u32 %v959, 4294901760
  %961 = vmatpush1.msra.mxu0 %v960
  %962 = vmatprep.subr.mxu0 0.0
  %v963 = vand.u32 %v773, 4294901760
  %v964 = vsub.f32 %v773, %v963
  %v965 = vand.u32 %v964, 4294901760
  %v966 = vsub.f32 %v964, %v965
  %v967 = vand.u32 %v966, 4294901760
  %968 = vmatpush1.msra.mxu0 %v967
  %969 = vmatprep.subr.mxu0 0.0
  %v970 = vand.u32 %v772, 4294901760
  %v971 = vsub.f32 %v772, %v970
  %v972 = vand.u32 %v971, 4294901760
  %v973 = vsub.f32 %v971, %v972
  %v974 = vand.u32 %v973, 4294901760
  %975 = vmatpush1.msra.mxu0 %v974
  %976 = vmatprep.subr.mxu0 0.0
  %977 = vmatpush2.msra.mxu0 0.0
  %978 = vmatprep.subr.mxu0 0.0
  %979 = vmatpush2.msra.mxu0 0.0
  %980 = vmatprep.subr.mxu0 0.0
  %981 = vmatpush2.msra.mxu0 0.0
  %982 = vmatprep.subr.mxu0 0.0
  %983 = vmatpush2.msra.mxu0 0.0
  %984 = vmatprep.subr.mxu0 0.0
  %985 = vmatpush2.msra.mxu0 0.0
  %986 = vmatprep.subr.mxu0 0.0
  %987 = vmatpush2.msra.mxu0 0.0
  %988 = vmatprep.subr.mxu0 0.0
  %989 = vmatpush2.msra.mxu0 0.0
  %990 = vmatprep.subr.mxu0 0.0
  %991 = vmatpush2.msra.mxu0 0.0
  %992 = vmatprep.subr.mxu0 0.0
  %993 = vmatpush2.msra.mxu0 0.0
  %994 = vmatprep.subr.mxu0 0.0
  %995 = vmatpush2.msra.mxu0 0.0
  %996 = vmatprep.subr.mxu0 0.0
  %997 = vmatpush2.msra.mxu0 0.0
  %998 = vmatprep.subr.mxu0 0.0
  %999 = vmatpush2.msra.mxu0 0.0
  %1000 = vmatprep.subr.mxu0 0.0
  %1001 = vmatpush2.msra.mxu0 0.0
  %1002 = vmatprep.subr.mxu0 0.0
  %1003 = vmatpush2.msra.mxu0 0.0
  %1004 = vmatprep.subr.mxu0 0.0
  %1005 = vmatpush2.msra.mxu0 0.0
  %1006 = vmatprep.subr.mxu0 0.0
  %1007 = vmatpush2.msra.mxu0 0.0
  %1008 = vmatprep.mubr.f32.mxu0 0.0
  %v1009 = vand.u32 %v801, 4294901760
  %1010 = vmatmul.mubr.f32.gmra.mxu0 %v1009
  %v1011 = vpop.f32.mrf.mxu0
  %v1012 = vadd.f32 %v891, %v1011
  %v1013 = vpop.f32.mrf.mxu0
  %1014 = vmatprep.mubr.f32.mxu0 0.0
  %v1015 = vand.u32 %v804, 4294901760
  %1016 = vmatmul.mubr.f32.gmra.mxu0 %v1015
  %v1017 = vpop.f32.mrf.mxu0
  %v1018 = vadd.f32 %v901, %v1017
  %v1019 = vpop.f32.mrf.mxu0
  %1020 = vmatprep.mubr.f32.mxu0 0.0
  %v1021 = vand.u32 %v807, 4294901760
  %1022 = vmatmul.mubr.f32.gmra.mxu0 %v1021
  %v1023 = vpop.f32.mrf.mxu0
  %v1024 = vadd.f32 %v911, %v1023
  %v1025 = vpop.f32.mrf.mxu0
  %1026 = vdwg.mxu0
  %1027 = vmatprep.subr.mxu0 0.0
  %1028 = vmatpush1.msra.mxu0 0.0
  %1029 = vmatprep.subr.mxu0 0.0
  %1030 = vmatpush1.msra.mxu0 0.0
  %1031 = vmatprep.subr.mxu0 0.0
  %1032 = vmatpush1.msra.mxu0 0.0
  %1033 = vmatprep.subr.mxu0 0.0
  %1034 = vmatpush1.msra.mxu0 0.0
  %1035 = vmatprep.subr.mxu0 0.0
  %1036 = vmatpush1.msra.mxu0 0.0
  %1037 = vmatprep.subr.mxu0 0.0
  %1038 = vmatpush1.msra.mxu0 0.0
  %1039 = vmatprep.subr.mxu0 0.0
  %1040 = vmatpush1.msra.mxu0 0.0
  %1041 = vmatprep.subr.mxu0 0.0
  %1042 = vmatpush1.msra.mxu0 0.0
  %1043 = vmatprep.subr.mxu0 0.0
  %1044 = vmatpush1.msra.mxu0 0.0
  %1045 = vmatprep.subr.mxu0 0.0
  %1046 = vmatpush1.msra.mxu0 0.0
  %1047 = vmatprep.subr.mxu0 0.0
  %v1048 = vand.u32 %v811, 4294901760
  %v1049 = vsub.f32 %v811, %v1048
  %1050 = vmatpush1.msra.mxu0 %v1049
  %1051 = vmatprep.subr.mxu0 0.0
  %v1052 = vand.u32 %v776, 4294901760
  %v1053 = vsub.f32 %v776, %v1052
  %1054 = vmatpush1.msra.mxu0 %v1053
  %1055 = vmatprep.subr.mxu0 0.0
  %v1056 = vand.u32 %v775, 4294901760
  %v1057 = vsub.f32 %v775, %v1056
  %1058 = vmatpush1.msra.mxu0 %v1057
  %1059 = vmatprep.subr.mxu0 0.0
  %v1060 = vand.u32 %v774, 4294901760
  %v1061 = vsub.f32 %v774, %v1060
  %1062 = vmatpush1.msra.mxu0 %v1061
  %1063 = vmatprep.subr.mxu0 0.0
  %v1064 = vand.u32 %v773, 4294901760
  %v1065 = vsub.f32 %v773, %v1064
  %1066 = vmatpush1.msra.mxu0 %v1065
  %1067 = vmatprep.subr.mxu0 0.0
  %v1068 = vand.u32 %v772, 4294901760
  %v1069 = vsub.f32 %v772, %v1068
  %1070 = vmatpush1.msra.mxu0 %v1069
  %1071 = vmatprep.subr.mxu0 0.0
  %1072 = vmatpush2.msra.mxu0 0.0
  %1073 = vmatprep.subr.mxu0 0.0
  %1074 = vmatpush2.msra.mxu0 0.0
  %1075 = vmatprep.subr.mxu0 0.0
  %1076 = vmatpush2.msra.mxu0 0.0
  %1077 = vmatprep.subr.mxu0 0.0
  %1078 = vmatpush2.msra.mxu0 0.0
  %1079 = vmatprep.subr.mxu0 0.0
  %1080 = vmatpush2.msra.mxu0 0.0
  %1081 = vmatprep.subr.mxu0 0.0
  %1082 = vmatpush2.msra.mxu0 0.0
  %1083 = vmatprep.subr.mxu0 0.0
  %1084 = vmatpush2.msra.mxu0 0.0
  %1085 = vmatprep.subr.mxu0 0.0
  %1086 = vmatpush2.msra.mxu0 0.0
  %1087 = vmatprep.subr.mxu0 0.0
  %1088 = vmatpush2.msra.mxu0 0.0
  %1089 = vmatprep.subr.mxu0 0.0
  %1090 = vmatpush2.msra.mxu0 0.0
  %1091 = vmatprep.subr.mxu0 0.0
  %1092 = vmatpush2.msra.mxu0 0.0
  %1093 = vmatprep.subr.mxu0 0.0
  %1094 = vmatpush2.msra.mxu0 0.0
  %1095 = vmatprep.subr.mxu0 0.0
  %1096 = vmatpush2.msra.mxu0 0.0
  %1097 = vmatprep.subr.mxu0 0.0
  %1098 = vmatpush2.msra.mxu0 0.0
  %1099 = vmatprep.subr.mxu0 0.0
  %1100 = vmatpush2.msra.mxu0 0.0
  %1101 = vmatprep.subr.mxu0 0.0
  %1102 = vmatpush2.msra.mxu0 0.0
  %1103 = vmatprep.mubr.f32.mxu0 0.0
  %v1104 = vand.u32 %v801, 4294901760
  %v1105 = vsub.f32 %v801, %v1104
  %1106 = vmatmul.mubr.f32.gmra.mxu0 %v1105
  %v1107 = vpop.f32.mrf.mxu0
  %v1108 = vadd.f32 %v1012, %v1107
  %v1109 = vpop.f32.mrf.mxu0
  %1110 = vmatprep.mubr.f32.mxu0 0.0
  %v1111 = vand.u32 %v804, 4294901760
  %v1112 = vsub.f32 %v804, %v1111
  %1113 = vmatmul.mubr.f32.gmra.mxu0 %v1112
  %v1114 = vpop.f32.mrf.mxu0
  %v1115 = vadd.f32 %v1018, %v1114
  %v1116 = vpop.f32.mrf.mxu0
  %1117 = vmatprep.mubr.f32.mxu0 0.0
  %v1118 = vand.u32 %v807, 4294901760
  %v1119 = vsub.f32 %v807, %v1118
  %1120 = vmatmul.mubr.f32.gmra.mxu0 %v1119
  %v1121 = vpop.f32.mrf.mxu0
  %v1122 = vadd.f32 %v1024, %v1121
  %v1123 = vpop.f32.mrf.mxu0
  %1124 = vdwg.mxu0
  %1125 = vmatprep.subr.mxu0 0.0
  %1126 = vmatpush1.msra.mxu0 0.0
  %1127 = vmatprep.subr.mxu0 0.0
  %1128 = vmatpush1.msra.mxu0 0.0
  %1129 = vmatprep.subr.mxu0 0.0
  %1130 = vmatpush1.msra.mxu0 0.0
  %1131 = vmatprep.subr.mxu0 0.0
  %1132 = vmatpush1.msra.mxu0 0.0
  %1133 = vmatprep.subr.mxu0 0.0
  %1134 = vmatpush1.msra.mxu0 0.0
  %1135 = vmatprep.subr.mxu0 0.0
  %1136 = vmatpush1.msra.mxu0 0.0
  %1137 = vmatprep.subr.mxu0 0.0
  %1138 = vmatpush1.msra.mxu0 0.0
  %1139 = vmatprep.subr.mxu0 0.0
  %1140 = vmatpush1.msra.mxu0 0.0
  %1141 = vmatprep.subr.mxu0 0.0
  %1142 = vmatpush1.msra.mxu0 0.0
  %1143 = vmatprep.subr.mxu0 0.0
  %1144 = vmatpush1.msra.mxu0 0.0
  %1145 = vmatprep.subr.mxu0 0.0
  %v1146 = vand.u32 %v811, 4294901760
  %1147 = vmatpush1.msra.mxu0 %v1146
  %1148 = vmatprep.subr.mxu0 0.0
  %v1149 = vand.u32 %v776, 4294901760
  %1150 = vmatpush1.msra.mxu0 %v1149
  %1151 = vmatprep.subr.mxu0 0.0
  %v1152 = vand.u32 %v775, 4294901760
  %1153 = vmatpush1.msra.mxu0 %v1152
  %1154 = vmatprep.subr.mxu0 0.0
  %v1155 = vand.u32 %v774, 4294901760
  %1156 = vmatpush1.msra.mxu0 %v1155
  %1157 = vmatprep.subr.mxu0 0.0
  %v1158 = vand.u32 %v773, 4294901760
  %1159 = vmatpush1.msra.mxu0 %v1158
  %1160 = vmatprep.subr.mxu0 0.0
  %v1161 = vand.u32 %v772, 4294901760
  %1162 = vmatpush1.msra.mxu0 %v1161
  %1163 = vmatprep.subr.mxu0 0.0
  %1164 = vmatpush2.msra.mxu0 0.0
  %1165 = vmatprep.subr.mxu0 0.0
  %1166 = vmatpush2.msra.mxu0 0.0
  %1167 = vmatprep.subr.mxu0 0.0
  %1168 = vmatpush2.msra.mxu0 0.0
  %1169 = vmatprep.subr.mxu0 0.0
  %1170 = vmatpush2.msra.mxu0 0.0
  %1171 = vmatprep.subr.mxu0 0.0
  %1172 = vmatpush2.msra.mxu0 0.0
  %1173 = vmatprep.subr.mxu0 0.0
  %1174 = vmatpush2.msra.mxu0 0.0
  %1175 = vmatprep.subr.mxu0 0.0
  %1176 = vmatpush2.msra.mxu0 0.0
  %1177 = vmatprep.subr.mxu0 0.0
  %1178 = vmatpush2.msra.mxu0 0.0
  %1179 = vmatprep.subr.mxu0 0.0
  %1180 = vmatpush2.msra.mxu0 0.0
  %1181 = vmatprep.subr.mxu0 0.0
  %1182 = vmatpush2.msra.mxu0 0.0
  %1183 = vmatprep.subr.mxu0 0.0
  %1184 = vmatpush2.msra.mxu0 0.0
  %1185 = vmatprep.subr.mxu0 0.0
  %1186 = vmatpush2.msra.mxu0 0.0
  %1187 = vmatprep.subr.mxu0 0.0
  %1188 = vmatpush2.msra.mxu0 0.0
  %1189 = vmatprep.subr.mxu0 0.0
  %1190 = vmatpush2.msra.mxu0 0.0
  %1191 = vmatprep.subr.mxu0 0.0
  %1192 = vmatpush2.msra.mxu0 0.0
  %1193 = vmatprep.subr.mxu0 0.0
  %1194 = vmatpush2.msra.mxu0 0.0
  %1195 = vmatprep.mubr.f32.mxu0 0.0
  %v1196 = vand.u32 %v801, 4294901760
  %v1197 = vsub.f32 %v801, %v1196
  %v1198 = vand.u32 %v1197, 4294901760
  %1199 = vmatmul.mubr.f32.gmra.mxu0 %v1198
  %v1200 = vpop.f32.mrf.mxu0
  %v1201 = vadd.f32 %v1108, %v1200
  %v1202 = vpop.f32.mrf.mxu0
  %1203 = vmatprep.mubr.f32.mxu0 0.0
  %v1204 = vand.u32 %v804, 4294901760
  %v1205 = vsub.f32 %v804, %v1204
  %v1206 = vand.u32 %v1205, 4294901760
  %1207 = vmatmul.mubr.f32.gmra.mxu0 %v1206
  %v1208 = vpop.f32.mrf.mxu0
  %v1209 = vadd.f32 %v1115, %v1208
  %v1210 = vpop.f32.mrf.mxu0
  %1211 = vmatprep.mubr.f32.mxu0 0.0
  %v1212 = vand.u32 %v807, 4294901760
  %v1213 = vsub.f32 %v807, %v1212
  %v1214 = vand.u32 %v1213, 4294901760
  %1215 = vmatmul.mubr.f32.gmra.mxu0 %v1214
  %v1216 = vpop.f32.mrf.mxu0
  %v1217 = vadd.f32 %v1122, %v1216
  %v1218 = vpop.f32.mrf.mxu0
  %1219 = vdwg.mxu0
  %1220 = vmatprep.subr.mxu0 0.0
  %1221 = vmatpush1.msra.mxu0 0.0
  %1222 = vmatprep.subr.mxu0 0.0
  %1223 = vmatpush1.msra.mxu0 0.0
  %1224 = vmatprep.subr.mxu0 0.0
  %1225 = vmatpush1.msra.mxu0 0.0
  %1226 = vmatprep.subr.mxu0 0.0
  %1227 = vmatpush1.msra.mxu0 0.0
  %1228 = vmatprep.subr.mxu0 0.0
  %1229 = vmatpush1.msra.mxu0 0.0
  %1230 = vmatprep.subr.mxu0 0.0
  %1231 = vmatpush1.msra.mxu0 0.0
  %1232 = vmatprep.subr.mxu0 0.0
  %1233 = vmatpush1.msra.mxu0 0.0
  %1234 = vmatprep.subr.mxu0 0.0
  %1235 = vmatpush1.msra.mxu0 0.0
  %1236 = vmatprep.subr.mxu0 0.0
  %1237 = vmatpush1.msra.mxu0 0.0
  %1238 = vmatprep.subr.mxu0 0.0
  %1239 = vmatpush1.msra.mxu0 0.0
  %1240 = vmatprep.subr.mxu0 0.0
  %v1241 = vand.u32 %v811, 4294901760
  %v1242 = vsub.f32 %v811, %v1241
  %v1243 = vand.u32 %v1242, 4294901760
  %1244 = vmatpush1.msra.mxu0 %v1243
  %1245 = vmatprep.subr.mxu0 0.0
  %v1246 = vand.u32 %v776, 4294901760
  %v1247 = vsub.f32 %v776, %v1246
  %v1248 = vand.u32 %v1247, 4294901760
  %1249 = vmatpush1.msra.mxu0 %v1248
  %1250 = vmatprep.subr.mxu0 0.0
  %v1251 = vand.u32 %v775, 4294901760
  %v1252 = vsub.f32 %v775, %v1251
  %v1253 = vand.u32 %v1252, 4294901760
  %1254 = vmatpush1.msra.mxu0 %v1253
  %1255 = vmatprep.subr.mxu0 0.0
  %v1256 = vand.u32 %v774, 4294901760
  %v1257 = vsub.f32 %v774, %v1256
  %v1258 = vand.u32 %v1257, 4294901760
  %1259 = vmatpush1.msra.mxu0 %v1258
  %1260 = vmatprep.subr.mxu0 0.0
  %v1261 = vand.u32 %v773, 4294901760
  %v1262 = vsub.f32 %v773, %v1261
  %v1263 = vand.u32 %v1262, 4294901760
  %1264 = vmatpush1.msra.mxu0 %v1263
  %1265 = vmatprep.subr.mxu0 0.0
  %v1266 = vand.u32 %v772, 4294901760
  %v1267 = vsub.f32 %v772, %v1266
  %v1268 = vand.u32 %v1267, 4294901760
  %1269 = vmatpush1.msra.mxu0 %v1268
  %1270 = vmatprep.subr.mxu0 0.0
  %1271 = vmatpush2.msra.mxu0 0.0
  %1272 = vmatprep.subr.mxu0 0.0
  %1273 = vmatpush2.msra.mxu0 0.0
  %1274 = vmatprep.subr.mxu0 0.0
  %1275 = vmatpush2.msra.mxu0 0.0
  %1276 = vmatprep.subr.mxu0 0.0
  %1277 = vmatpush2.msra.mxu0 0.0
  %1278 = vmatprep.subr.mxu0 0.0
  %1279 = vmatpush2.msra.mxu0 0.0
  %1280 = vmatprep.subr.mxu0 0.0
  %1281 = vmatpush2.msra.mxu0 0.0
  %1282 = vmatprep.subr.mxu0 0.0
  %1283 = vmatpush2.msra.mxu0 0.0
  %1284 = vmatprep.subr.mxu0 0.0
  %1285 = vmatpush2.msra.mxu0 0.0
  %1286 = vmatprep.subr.mxu0 0.0
  %1287 = vmatpush2.msra.mxu0 0.0
  %1288 = vmatprep.subr.mxu0 0.0
  %1289 = vmatpush2.msra.mxu0 0.0
  %1290 = vmatprep.subr.mxu0 0.0
  %1291 = vmatpush2.msra.mxu0 0.0
  %1292 = vmatprep.subr.mxu0 0.0
  %1293 = vmatpush2.msra.mxu0 0.0
  %1294 = vmatprep.subr.mxu0 0.0
  %1295 = vmatpush2.msra.mxu0 0.0
  %1296 = vmatprep.subr.mxu0 0.0
  %1297 = vmatpush2.msra.mxu0 0.0
  %1298 = vmatprep.subr.mxu0 0.0
  %1299 = vmatpush2.msra.mxu0 0.0
  %1300 = vmatprep.subr.mxu0 0.0
  %1301 = vmatpush2.msra.mxu0 0.0
  %1302 = vmatprep.mubr.f32.mxu0 0.0
  %v1303 = vand.u32 %v801, 4294901760
  %1304 = vmatmul.mubr.f32.gmra.mxu0 %v1303
  %v1305 = vpop.f32.mrf.mxu0
  %v1306 = vadd.f32 %v1201, %v1305
  %v1307 = vpop.f32.mrf.mxu0
  %1308 = vmatprep.mubr.f32.mxu0 0.0
  %v1309 = vand.u32 %v804, 4294901760
  %1310 = vmatmul.mubr.f32.gmra.mxu0 %v1309
  %v1311 = vpop.f32.mrf.mxu0
  %v1312 = vadd.f32 %v1209, %v1311
  %v1313 = vpop.f32.mrf.mxu0
  %1314 = vmatprep.mubr.f32.mxu0 0.0
  %v1315 = vand.u32 %v807, 4294901760
  %1316 = vmatmul.mubr.f32.gmra.mxu0 %v1315
  %v1317 = vpop.f32.mrf.mxu0
  %v1318 = vadd.f32 %v1217, %v1317
  %v1319 = vpop.f32.mrf.mxu0
  %1320 = vdwg.mxu0
  %1321 = vmatprep.subr.mxu0 0.0
  %1322 = vmatpush1.msra.mxu0 0.0
  %1323 = vmatprep.subr.mxu0 0.0
  %1324 = vmatpush1.msra.mxu0 0.0
  %1325 = vmatprep.subr.mxu0 0.0
  %1326 = vmatpush1.msra.mxu0 0.0
  %1327 = vmatprep.subr.mxu0 0.0
  %1328 = vmatpush1.msra.mxu0 0.0
  %1329 = vmatprep.subr.mxu0 0.0
  %1330 = vmatpush1.msra.mxu0 0.0
  %1331 = vmatprep.subr.mxu0 0.0
  %1332 = vmatpush1.msra.mxu0 0.0
  %1333 = vmatprep.subr.mxu0 0.0
  %1334 = vmatpush1.msra.mxu0 0.0
  %1335 = vmatprep.subr.mxu0 0.0
  %1336 = vmatpush1.msra.mxu0 0.0
  %1337 = vmatprep.subr.mxu0 0.0
  %1338 = vmatpush1.msra.mxu0 0.0
  %1339 = vmatprep.subr.mxu0 0.0
  %1340 = vmatpush1.msra.mxu0 0.0
  %1341 = vmatprep.subr.mxu0 0.0
  %v1342 = vand.u32 %v811, 4294901760
  %1343 = vmatpush1.msra.mxu0 %v1342
  %1344 = vmatprep.subr.mxu0 0.0
  %v1345 = vand.u32 %v776, 4294901760
  %1346 = vmatpush1.msra.mxu0 %v1345
  %1347 = vmatprep.subr.mxu0 0.0
  %v1348 = vand.u32 %v775, 4294901760
  %1349 = vmatpush1.msra.mxu0 %v1348
  %1350 = vmatprep.subr.mxu0 0.0
  %v1351 = vand.u32 %v774, 4294901760
  %1352 = vmatpush1.msra.mxu0 %v1351
  %1353 = vmatprep.subr.mxu0 0.0
  %v1354 = vand.u32 %v773, 4294901760
  %1355 = vmatpush1.msra.mxu0 %v1354
  %1356 = vmatprep.subr.mxu0 0.0
  %v1357 = vand.u32 %v772, 4294901760
  %1358 = vmatpush1.msra.mxu0 %v1357
  %1359 = vmatprep.subr.mxu0 0.0
  %1360 = vmatpush2.msra.mxu0 0.0
  %1361 = vmatprep.subr.mxu0 0.0
  %1362 = vmatpush2.msra.mxu0 0.0
  %1363 = vmatprep.subr.mxu0 0.0
  %1364 = vmatpush2.msra.mxu0 0.0
  %1365 = vmatprep.subr.mxu0 0.0
  %1366 = vmatpush2.msra.mxu0 0.0
  %1367 = vmatprep.subr.mxu0 0.0
  %1368 = vmatpush2.msra.mxu0 0.0
  %1369 = vmatprep.subr.mxu0 0.0
  %1370 = vmatpush2.msra.mxu0 0.0
  %1371 = vmatprep.subr.mxu0 0.0
  %1372 = vmatpush2.msra.mxu0 0.0
  %1373 = vmatprep.subr.mxu0 0.0
  %1374 = vmatpush2.msra.mxu0 0.0
  %1375 = vmatprep.subr.mxu0 0.0
  %1376 = vmatpush2.msra.mxu0 0.0
  %1377 = vmatprep.subr.mxu0 0.0
  %1378 = vmatpush2.msra.mxu0 0.0
  %1379 = vmatprep.subr.mxu0 0.0
  %1380 = vmatpush2.msra.mxu0 0.0
  %1381 = vmatprep.subr.mxu0 0.0
  %1382 = vmatpush2.msra.mxu0 0.0
  %1383 = vmatprep.subr.mxu0 0.0
  %1384 = vmatpush2.msra.mxu0 0.0
  %1385 = vmatprep.subr.mxu0 0.0
  %1386 = vmatpush2.msra.mxu0 0.0
  %1387 = vmatprep.subr.mxu0 0.0
  %1388 = vmatpush2.msra.mxu0 0.0
  %1389 = vmatprep.subr.mxu0 0.0
  %1390 = vmatpush2.msra.mxu0 0.0
  %1391 = vmatprep.mubr.f32.mxu0 0.0
  %v1392 = vand.u32 %v801, 4294901760
  %1393 = vmatmul.mubr.f32.gmra.mxu0 %v1392
  %v1394 = vpop.f32.mrf.mxu0
  %v1395 = vadd.f32 %v1306, %v1394
  %v1396 = vpop.f32.mrf.mxu0
  %1397 = vmatprep.mubr.f32.mxu0 0.0
  %v1398 = vand.u32 %v804, 4294901760
  %1399 = vmatmul.mubr.f32.gmra.mxu0 %v1398
  %v1400 = vpop.f32.mrf.mxu0
  %v1401 = vadd.f32 %v1312, %v1400
  %v1402 = vpop.f32.mrf.mxu0
  %1403 = vmatprep.mubr.f32.mxu0 0.0
  %v1404 = vand.u32 %v807, 4294901760
  %1405 = vmatmul.mubr.f32.gmra.mxu0 %v1404
  %v1406 = vpop.f32.mrf.mxu0
  %v1407 = vadd.f32 %v1318, %v1406
  %v1408 = vpop.f32.mrf.mxu0
  %1409 = vdwg.mxu0
  %v1410 = vtanh.pop %v1395
  %v1411 = vtanh.pop %v1401
  %v1412 = vtanh.pop %v1407
  %v1413 = vld [vmem:[%s5] sm:$0x3]
  %v1414 = vld [vmem:[%s6] sm:$0x3]
  %1416 = vset.pattern.permute.xlu0 0
  %1417 = vperm.xlu0 %1416, %v1414
  %v1418 = vpop.permute.xlu0 %1417
  %v1421 = vsel %vm74, %v1413, 0
  %v1424 = vsel %vm93, %v1412, 0
  %1426 = vmatprep.subr.mxu0 0.0
  %1427 = vmatpush1.msra.mxu0 0.0
  %1428 = vmatprep.subr.mxu0 0.0
  %1429 = vmatpush1.msra.mxu0 0.0
  %1430 = vmatprep.subr.mxu0 0.0
  %1431 = vmatpush1.msra.mxu0 0.0
  %1432 = vmatprep.subr.mxu0 0.0
  %1433 = vmatpush1.msra.mxu0 0.0
  %1434 = vmatprep.subr.mxu0 0.0
  %1435 = vmatpush1.msra.mxu0 0.0
  %1436 = vmatprep.subr.mxu0 0.0
  %1437 = vmatpush1.msra.mxu0 0.0
  %1438 = vmatprep.subr.mxu0 0.0
  %1439 = vmatpush1.msra.mxu0 0.0
  %1440 = vmatprep.subr.mxu0 0.0
  %1441 = vmatpush1.msra.mxu0 0.0
  %1442 = vmatprep.subr.mxu0 0.0
  %1443 = vmatpush1.msra.mxu0 0.0
  %1444 = vmatprep.subr.mxu0 0.0
  %1445 = vmatpush1.msra.mxu0 0.0
  %1446 = vmatprep.subr.mxu0 0.0
  %1447 = vmatpush1.msra.mxu0 0.0
  %1448 = vmatprep.subr.mxu0 0.0
  %1449 = vmatpush1.msra.mxu0 0.0
  %1450 = vmatprep.subr.mxu0 0.0
  %1451 = vmatpush1.msra.mxu0 0.0
  %1452 = vmatprep.subr.mxu0 0.0
  %v1453 = vand.u32 %v1424, 4294901760
  %1454 = vmatpush1.msra.mxu0 %v1453
  %1455 = vmatprep.subr.mxu0 0.0
  %v1456 = vand.u32 %v1411, 4294901760
  %1457 = vmatpush1.msra.mxu0 %v1456
  %1458 = vmatprep.subr.mxu0 0.0
  %v1459 = vand.u32 %v1410, 4294901760
  %1460 = vmatpush1.msra.mxu0 %v1459
  %1461 = vmatprep.subr.mxu0 0.0
  %1462 = vmatpush2.msra.mxu0 0.0
  %1463 = vmatprep.subr.mxu0 0.0
  %1464 = vmatpush2.msra.mxu0 0.0
  %1465 = vmatprep.subr.mxu0 0.0
  %1466 = vmatpush2.msra.mxu0 0.0
  %1467 = vmatprep.subr.mxu0 0.0
  %1468 = vmatpush2.msra.mxu0 0.0
  %1469 = vmatprep.subr.mxu0 0.0
  %1470 = vmatpush2.msra.mxu0 0.0
  %1471 = vmatprep.subr.mxu0 0.0
  %1472 = vmatpush2.msra.mxu0 0.0
  %1473 = vmatprep.subr.mxu0 0.0
  %1474 = vmatpush2.msra.mxu0 0.0
  %1475 = vmatprep.subr.mxu0 0.0
  %1476 = vmatpush2.msra.mxu0 0.0
  %1477 = vmatprep.subr.mxu0 0.0
  %1478 = vmatpush2.msra.mxu0 0.0
  %1479 = vmatprep.subr.mxu0 0.0
  %1480 = vmatpush2.msra.mxu0 0.0
  %1481 = vmatprep.subr.mxu0 0.0
  %1482 = vmatpush2.msra.mxu0 0.0
  %1483 = vmatprep.subr.mxu0 0.0
  %1484 = vmatpush2.msra.mxu0 0.0
  %1485 = vmatprep.subr.mxu0 0.0
  %1486 = vmatpush2.msra.mxu0 0.0
  %1487 = vmatprep.subr.mxu0 0.0
  %1488 = vmatpush2.msra.mxu0 0.0
  %1489 = vmatprep.subr.mxu0 0.0
  %1490 = vmatpush2.msra.mxu0 0.0
  %1491 = vmatprep.subr.mxu0 0.0
  %1492 = vmatpush2.msra.mxu0 0.0
  %1493 = vmatprep.mubr.f32.mxu0 0.0
  %v1494 = vand.u32 %v1421, 4294901760
  %v1495 = vsub.f32 %v1421, %v1494
  %v1496 = vand.u32 %v1495, 4294901760
  %v1497 = vsub.f32 %v1495, %v1496
  %v1498 = vand.u32 %v1497, 4294901760
  %1499 = vmatmul.mubr.f32.gmra.mxu0 %v1498
  %v1500 = vpop.f32.mrf.mxu0
  %v1501 = vadd.f32 %v1418, %v1500
  %v1502 = vpop.f32.mrf.mxu0
  %1503 = vdwg.mxu0
  %1504 = vmatprep.subr.mxu0 0.0
  %1505 = vmatpush1.msra.mxu0 0.0
  %1506 = vmatprep.subr.mxu0 0.0
  %1507 = vmatpush1.msra.mxu0 0.0
  %1508 = vmatprep.subr.mxu0 0.0
  %1509 = vmatpush1.msra.mxu0 0.0
  %1510 = vmatprep.subr.mxu0 0.0
  %1511 = vmatpush1.msra.mxu0 0.0
  %1512 = vmatprep.subr.mxu0 0.0
  %1513 = vmatpush1.msra.mxu0 0.0
  %1514 = vmatprep.subr.mxu0 0.0
  %1515 = vmatpush1.msra.mxu0 0.0
  %1516 = vmatprep.subr.mxu0 0.0
  %1517 = vmatpush1.msra.mxu0 0.0
  %1518 = vmatprep.subr.mxu0 0.0
  %1519 = vmatpush1.msra.mxu0 0.0
  %1520 = vmatprep.subr.mxu0 0.0
  %1521 = vmatpush1.msra.mxu0 0.0
  %1522 = vmatprep.subr.mxu0 0.0
  %1523 = vmatpush1.msra.mxu0 0.0
  %1524 = vmatprep.subr.mxu0 0.0
  %1525 = vmatpush1.msra.mxu0 0.0
  %1526 = vmatprep.subr.mxu0 0.0
  %1527 = vmatpush1.msra.mxu0 0.0
  %1528 = vmatprep.subr.mxu0 0.0
  %1529 = vmatpush1.msra.mxu0 0.0
  %1530 = vmatprep.subr.mxu0 0.0
  %v1531 = vand.u32 %v1424, 4294901760
  %v1532 = vsub.f32 %v1424, %v1531
  %v1533 = vand.u32 %v1532, 4294901760
  %v1534 = vsub.f32 %v1532, %v1533
  %v1535 = vand.u32 %v1534, 4294901760
  %1536 = vmatpush1.msra.mxu0 %v1535
  %1537 = vmatprep.subr.mxu0 0.0
  %v1538 = vand.u32 %v1411, 4294901760
  %v1539 = vsub.f32 %v1411, %v1538
  %v1540 = vand.u32 %v1539, 4294901760
  %v1541 = vsub.f32 %v1539, %v1540
  %v1542 = vand.u32 %v1541, 4294901760
  %1543 = vmatpush1.msra.mxu0 %v1542
  %1544 = vmatprep.subr.mxu0 0.0
  %v1545 = vand.u32 %v1410, 4294901760
  %v1546 = vsub.f32 %v1410, %v1545
  %v1547 = vand.u32 %v1546, 4294901760
  %v1548 = vsub.f32 %v1546, %v1547
  %v1549 = vand.u32 %v1548, 4294901760
  %1550 = vmatpush1.msra.mxu0 %v1549
  %1551 = vmatprep.subr.mxu0 0.0
  %1552 = vmatpush2.msra.mxu0 0.0
  %1553 = vmatprep.subr.mxu0 0.0
  %1554 = vmatpush2.msra.mxu0 0.0
  %1555 = vmatprep.subr.mxu0 0.0
  %1556 = vmatpush2.msra.mxu0 0.0
  %1557 = vmatprep.subr.mxu0 0.0
  %1558 = vmatpush2.msra.mxu0 0.0
  %1559 = vmatprep.subr.mxu0 0.0
  %1560 = vmatpush2.msra.mxu0 0.0
  %1561 = vmatprep.subr.mxu0 0.0
  %1562 = vmatpush2.msra.mxu0 0.0
  %1563 = vmatprep.subr.mxu0 0.0
  %1564 = vmatpush2.msra.mxu0 0.0
  %1565 = vmatprep.subr.mxu0 0.0
  %1566 = vmatpush2.msra.mxu0 0.0
  %1567 = vmatprep.subr.mxu0 0.0
  %1568 = vmatpush2.msra.mxu0 0.0
  %1569 = vmatprep.subr.mxu0 0.0
  %1570 = vmatpush2.msra.mxu0 0.0
  %1571 = vmatprep.subr.mxu0 0.0
  %1572 = vmatpush2.msra.mxu0 0.0
  %1573 = vmatprep.subr.mxu0 0.0
  %1574 = vmatpush2.msra.mxu0 0.0
  %1575 = vmatprep.subr.mxu0 0.0
  %1576 = vmatpush2.msra.mxu0 0.0
  %1577 = vmatprep.subr.mxu0 0.0
  %1578 = vmatpush2.msra.mxu0 0.0
  %1579 = vmatprep.subr.mxu0 0.0
  %1580 = vmatpush2.msra.mxu0 0.0
  %1581 = vmatprep.subr.mxu0 0.0
  %1582 = vmatpush2.msra.mxu0 0.0
  %1583 = vmatprep.mubr.f32.mxu0 0.0
  %v1584 = vand.u32 %v1421, 4294901760
  %1585 = vmatmul.mubr.f32.gmra.mxu0 %v1584
  %v1586 = vpop.f32.mrf.mxu0
  %v1587 = vadd.f32 %v1501, %v1586
  %v1588 = vpop.f32.mrf.mxu0
  %1589 = vdwg.mxu0
  %1590 = vmatprep.subr.mxu0 0.0
  %1591 = vmatpush1.msra.mxu0 0.0
  %1592 = vmatprep.subr.mxu0 0.0
  %1593 = vmatpush1.msra.mxu0 0.0
  %1594 = vmatprep.subr.mxu0 0.0
  %1595 = vmatpush1.msra.mxu0 0.0
  %1596 = vmatprep.subr.mxu0 0.0
  %1597 = vmatpush1.msra.mxu0 0.0
  %1598 = vmatprep.subr.mxu0 0.0
  %1599 = vmatpush1.msra.mxu0 0.0
  %1600 = vmatprep.subr.mxu0 0.0
  %1601 = vmatpush1.msra.mxu0 0.0
  %1602 = vmatprep.subr.mxu0 0.0
  %1603 = vmatpush1.msra.mxu0 0.0
  %1604 = vmatprep.subr.mxu0 0.0
  %1605 = vmatpush1.msra.mxu0 0.0
  %1606 = vmatprep.subr.mxu0 0.0
  %1607 = vmatpush1.msra.mxu0 0.0
  %1608 = vmatprep.subr.mxu0 0.0
  %1609 = vmatpush1.msra.mxu0 0.0
  %1610 = vmatprep.subr.mxu0 0.0
  %1611 = vmatpush1.msra.mxu0 0.0
  %1612 = vmatprep.subr.mxu0 0.0
  %1613 = vmatpush1.msra.mxu0 0.0
  %1614 = vmatprep.subr.mxu0 0.0
  %1615 = vmatpush1.msra.mxu0 0.0
  %1616 = vmatprep.subr.mxu0 0.0
  %v1617 = vand.u32 %v1424, 4294901760
  %v1618 = vsub.f32 %v1424, %v1617
  %1619 = vmatpush1.msra.mxu0 %v1618
  %1620 = vmatprep.subr.mxu0 0.0
  %v1621 = vand.u32 %v1411, 4294901760
  %v1622 = vsub.f32 %v1411, %v1621
  %1623 = vmatpush1.msra.mxu0 %v1622
  %1624 = vmatprep.subr.mxu0 0.0
  %v1625 = vand.u32 %v1410, 4294901760
  %v1626 = vsub.f32 %v1410, %v1625
  %1627 = vmatpush1.msra.mxu0 %v1626
  %1628 = vmatprep.subr.mxu0 0.0
  %1629 = vmatpush2.msra.mxu0 0.0
  %1630 = vmatprep.subr.mxu0 0.0
  %1631 = vmatpush2.msra.mxu0 0.0
  %1632 = vmatprep.subr.mxu0 0.0
  %1633 = vmatpush2.msra.mxu0 0.0
  %1634 = vmatprep.subr.mxu0 0.0
  %1635 = vmatpush2.msra.mxu0 0.0
  %1636 = vmatprep.subr.mxu0 0.0
  %1637 = vmatpush2.msra.mxu0 0.0
  %1638 = vmatprep.subr.mxu0 0.0
  %1639 = vmatpush2.msra.mxu0 0.0
  %1640 = vmatprep.subr.mxu0 0.0
  %1641 = vmatpush2.msra.mxu0 0.0
  %1642 = vmatprep.subr.mxu0 0.0
  %1643 = vmatpush2.msra.mxu0 0.0
  %1644 = vmatprep.subr.mxu0 0.0
  %1645 = vmatpush2.msra.mxu0 0.0
  %1646 = vmatprep.subr.mxu0 0.0
  %1647 = vmatpush2.msra.mxu0 0.0
  %1648 = vmatprep.subr.mxu0 0.0
  %1649 = vmatpush2.msra.mxu0 0.0
  %1650 = vmatprep.subr.mxu0 0.0
  %1651 = vmatpush2.msra.mxu0 0.0
  %1652 = vmatprep.subr.mxu0 0.0
  %1653 = vmatpush2.msra.mxu0 0.0
  %1654 = vmatprep.subr.mxu0 0.0
  %1655 = vmatpush2.msra.mxu0 0.0
  %1656 = vmatprep.subr.mxu0 0.0
  %1657 = vmatpush2.msra.mxu0 0.0
  %1658 = vmatprep.subr.mxu0 0.0
  %1659 = vmatpush2.msra.mxu0 0.0
  %1660 = vmatprep.mubr.f32.mxu0 0.0
  %v1661 = vand.u32 %v1421, 4294901760
  %v1662 = vsub.f32 %v1421, %v1661
  %1663 = vmatmul.mubr.f32.gmra.mxu0 %v1662
  %v1664 = vpop.f32.mrf.mxu0
  %v1665 = vadd.f32 %v1587, %v1664
  %v1666 = vpop.f32.mrf.mxu0
  %1667 = vdwg.mxu0
  %1668 = vmatprep.subr.mxu0 0.0
  %1669 = vmatpush1.msra.mxu0 0.0
  %1670 = vmatprep.subr.mxu0 0.0
  %1671 = vmatpush1.msra.mxu0 0.0
  %1672 = vmatprep.subr.mxu0 0.0
  %1673 = vmatpush1.msra.mxu0 0.0
  %1674 = vmatprep.subr.mxu0 0.0
  %1675 = vmatpush1.msra.mxu0 0.0
  %1676 = vmatprep.subr.mxu0 0.0
  %1677 = vmatpush1.msra.mxu0 0.0
  %1678 = vmatprep.subr.mxu0 0.0
  %1679 = vmatpush1.msra.mxu0 0.0
  %1680 = vmatprep.subr.mxu0 0.0
  %1681 = vmatpush1.msra.mxu0 0.0
  %1682 = vmatprep.subr.mxu0 0.0
  %1683 = vmatpush1.msra.mxu0 0.0
  %1684 = vmatprep.subr.mxu0 0.0
  %1685 = vmatpush1.msra.mxu0 0.0
  %1686 = vmatprep.subr.mxu0 0.0
  %1687 = vmatpush1.msra.mxu0 0.0
  %1688 = vmatprep.subr.mxu0 0.0
  %1689 = vmatpush1.msra.mxu0 0.0
  %1690 = vmatprep.subr.mxu0 0.0
  %1691 = vmatpush1.msra.mxu0 0.0
  %1692 = vmatprep.subr.mxu0 0.0
  %1693 = vmatpush1.msra.mxu0 0.0
  %1694 = vmatprep.subr.mxu0 0.0
  %v1695 = vand.u32 %v1424, 4294901760
  %1696 = vmatpush1.msra.mxu0 %v1695
  %1697 = vmatprep.subr.mxu0 0.0
  %v1698 = vand.u32 %v1411, 4294901760
  %1699 = vmatpush1.msra.mxu0 %v1698
  %1700 = vmatprep.subr.mxu0 0.0
  %v1701 = vand.u32 %v1410, 4294901760
  %1702 = vmatpush1.msra.mxu0 %v1701
  %1703 = vmatprep.subr.mxu0 0.0
  %1704 = vmatpush2.msra.mxu0 0.0
  %1705 = vmatprep.subr.mxu0 0.0
  %1706 = vmatpush2.msra.mxu0 0.0
  %1707 = vmatprep.subr.mxu0 0.0
  %1708 = vmatpush2.msra.mxu0 0.0
  %1709 = vmatprep.subr.mxu0 0.0
  %1710 = vmatpush2.msra.mxu0 0.0
  %1711 = vmatprep.subr.mxu0 0.0
  %1712 = vmatpush2.msra.mxu0 0.0
  %1713 = vmatprep.subr.mxu0 0.0
  %1714 = vmatpush2.msra.mxu0 0.0
  %1715 = vmatprep.subr.mxu0 0.0
  %1716 = vmatpush2.msra.mxu0 0.0
  %1717 = vmatprep.subr.mxu0 0.0
  %1718 = vmatpush2.msra.mxu0 0.0
  %1719 = vmatprep.subr.mxu0 0.0
  %1720 = vmatpush2.msra.mxu0 0.0
  %1721 = vmatprep.subr.mxu0 0.0
  %1722 = vmatpush2.msra.mxu0 0.0
  %1723 = vmatprep.subr.mxu0 0.0
  %1724 = vmatpush2.msra.mxu0 0.0
  %1725 = vmatprep.subr.mxu0 0.0
  %1726 = vmatpush2.msra.mxu0 0.0
  %1727 = vmatprep.subr.mxu0 0.0
  %1728 = vmatpush2.msra.mxu0 0.0
  %1729 = vmatprep.subr.mxu0 0.0
  %1730 = vmatpush2.msra.mxu0 0.0
  %1731 = vmatprep.subr.mxu0 0.0
  %1732 = vmatpush2.msra.mxu0 0.0
  %1733 = vmatprep.subr.mxu0 0.0
  %1734 = vmatpush2.msra.mxu0 0.0
  %1735 = vmatprep.mubr.f32.mxu0 0.0
  %v1736 = vand.u32 %v1421, 4294901760
  %v1737 = vsub.f32 %v1421, %v1736
  %v1738 = vand.u32 %v1737, 4294901760
  %1739 = vmatmul.mubr.f32.gmra.mxu0 %v1738
  %v1740 = vpop.f32.mrf.mxu0
  %v1741 = vadd.f32 %v1665, %v1740
  %v1742 = vpop.f32.mrf.mxu0
  %1743 = vdwg.mxu0
  %1744 = vmatprep.subr.mxu0 0.0
  %1745 = vmatpush1.msra.mxu0 0.0
  %1746 = vmatprep.subr.mxu0 0.0
  %1747 = vmatpush1.msra.mxu0 0.0
  %1748 = vmatprep.subr.mxu0 0.0
  %1749 = vmatpush1.msra.mxu0 0.0
  %1750 = vmatprep.subr.mxu0 0.0
  %1751 = vmatpush1.msra.mxu0 0.0
  %1752 = vmatprep.subr.mxu0 0.0
  %1753 = vmatpush1.msra.mxu0 0.0
  %1754 = vmatprep.subr.mxu0 0.0
  %1755 = vmatpush1.msra.mxu0 0.0
  %1756 = vmatprep.subr.mxu0 0.0
  %1757 = vmatpush1.msra.mxu0 0.0
  %1758 = vmatprep.subr.mxu0 0.0
  %1759 = vmatpush1.msra.mxu0 0.0
  %1760 = vmatprep.subr.mxu0 0.0
  %1761 = vmatpush1.msra.mxu0 0.0
  %1762 = vmatprep.subr.mxu0 0.0
  %1763 = vmatpush1.msra.mxu0 0.0
  %1764 = vmatprep.subr.mxu0 0.0
  %1765 = vmatpush1.msra.mxu0 0.0
  %1766 = vmatprep.subr.mxu0 0.0
  %1767 = vmatpush1.msra.mxu0 0.0
  %1768 = vmatprep.subr.mxu0 0.0
  %1769 = vmatpush1.msra.mxu0 0.0
  %1770 = vmatprep.subr.mxu0 0.0
  %v1771 = vand.u32 %v1424, 4294901760
  %v1772 = vsub.f32 %v1424, %v1771
  %v1773 = vand.u32 %v1772, 4294901760
  %1774 = vmatpush1.msra.mxu0 %v1773
  %1775 = vmatprep.subr.mxu0 0.0
  %v1776 = vand.u32 %v1411, 4294901760
  %v1777 = vsub.f32 %v1411, %v1776
  %v1778 = vand.u32 %v1777, 4294901760
  %1779 = vmatpush1.msra.mxu0 %v1778
  %1780 = vmatprep.subr.mxu0 0.0
  %v1781 = vand.u32 %v1410, 4294901760
  %v1782 = vsub.f32 %v1410, %v1781
  %v1783 = vand.u32 %v1782, 4294901760
  %1784 = vmatpush1.msra.mxu0 %v1783
  %1785 = vmatprep.subr.mxu0 0.0
  %1786 = vmatpush2.msra.mxu0 0.0
  %1787 = vmatprep.subr.mxu0 0.0
  %1788 = vmatpush2.msra.mxu0 0.0
  %1789 = vmatprep.subr.mxu0 0.0
  %1790 = vmatpush2.msra.mxu0 0.0
  %1791 = vmatprep.subr.mxu0 0.0
  %1792 = vmatpush2.msra.mxu0 0.0
  %1793 = vmatprep.subr.mxu0 0.0
  %1794 = vmatpush2.msra.mxu0 0.0
  %1795 = vmatprep.subr.mxu0 0.0
  %1796 = vmatpush2.msra.mxu0 0.0
  %1797 = vmatprep.subr.mxu0 0.0
  %1798 = vmatpush2.msra.mxu0 0.0
  %1799 = vmatprep.subr.mxu0 0.0
  %1800 = vmatpush2.msra.mxu0 0.0
  %1801 = vmatprep.subr.mxu0 0.0
  %1802 = vmatpush2.msra.mxu0 0.0
  %1803 = vmatprep.subr.mxu0 0.0
  %1804 = vmatpush2.msra.mxu0 0.0
  %1805 = vmatprep.subr.mxu0 0.0
  %1806 = vmatpush2.msra.mxu0 0.0
  %1807 = vmatprep.subr.mxu0 0.0
  %1808 = vmatpush2.msra.mxu0 0.0
  %1809 = vmatprep.subr.mxu0 0.0
  %1810 = vmatpush2.msra.mxu0 0.0
  %1811 = vmatprep.subr.mxu0 0.0
  %1812 = vmatpush2.msra.mxu0 0.0
  %1813 = vmatprep.subr.mxu0 0.0
  %1814 = vmatpush2.msra.mxu0 0.0
  %1815 = vmatprep.subr.mxu0 0.0
  %1816 = vmatpush2.msra.mxu0 0.0
  %1817 = vmatprep.mubr.f32.mxu0 0.0
  %v1818 = vand.u32 %v1421, 4294901760
  %1819 = vmatmul.mubr.f32.gmra.mxu0 %v1818
  %v1820 = vpop.f32.mrf.mxu0
  %v1821 = vadd.f32 %v1741, %v1820
  %v1822 = vpop.f32.mrf.mxu0
  %1823 = vdwg.mxu0
  %1824 = vmatprep.subr.mxu0 0.0
  %1825 = vmatpush1.msra.mxu0 0.0
  %1826 = vmatprep.subr.mxu0 0.0
  %1827 = vmatpush1.msra.mxu0 0.0
  %1828 = vmatprep.subr.mxu0 0.0
  %1829 = vmatpush1.msra.mxu0 0.0
  %1830 = vmatprep.subr.mxu0 0.0
  %1831 = vmatpush1.msra.mxu0 0.0
  %1832 = vmatprep.subr.mxu0 0.0
  %1833 = vmatpush1.msra.mxu0 0.0
  %1834 = vmatprep.subr.mxu0 0.0
  %1835 = vmatpush1.msra.mxu0 0.0
  %1836 = vmatprep.subr.mxu0 0.0
  %1837 = vmatpush1.msra.mxu0 0.0
  %1838 = vmatprep.subr.mxu0 0.0
  %1839 = vmatpush1.msra.mxu0 0.0
  %1840 = vmatprep.subr.mxu0 0.0
  %1841 = vmatpush1.msra.mxu0 0.0
  %1842 = vmatprep.subr.mxu0 0.0
  %1843 = vmatpush1.msra.mxu0 0.0
  %1844 = vmatprep.subr.mxu0 0.0
  %1845 = vmatpush1.msra.mxu0 0.0
  %1846 = vmatprep.subr.mxu0 0.0
  %1847 = vmatpush1.msra.mxu0 0.0
  %1848 = vmatprep.subr.mxu0 0.0
  %1849 = vmatpush1.msra.mxu0 0.0
  %1850 = vmatprep.subr.mxu0 0.0
  %v1851 = vand.u32 %v1424, 4294901760
  %1852 = vmatpush1.msra.mxu0 %v1851
  %1853 = vmatprep.subr.mxu0 0.0
  %v1854 = vand.u32 %v1411, 4294901760
  %1855 = vmatpush1.msra.mxu0 %v1854
  %1856 = vmatprep.subr.mxu0 0.0
  %v1857 = vand.u32 %v1410, 4294901760
  %1858 = vmatpush1.msra.mxu0 %v1857
  %1859 = vmatprep.subr.mxu0 0.0
  %1860 = vmatpush2.msra.mxu0 0.0
  %1861 = vmatprep.subr.mxu0 0.0
  %1862 = vmatpush2.msra.mxu0 0.0
  %1863 = vmatprep.subr.mxu0 0.0
  %1864 = vmatpush2.msra.mxu0 0.0
  %1865 = vmatprep.subr.mxu0 0.0
  %1866 = vmatpush2.msra.mxu0 0.0
  %1867 = vmatprep.subr.mxu0 0.0
  %1868 = vmatpush2.msra.mxu0 0.0
  %1869 = vmatprep.subr.mxu0 0.0
  %1870 = vmatpush2.msra.mxu0 0.0
  %1871 = vmatprep.subr.mxu0 0.0
  %1872 = vmatpush2.msra.mxu0 0.0
  %1873 = vmatprep.subr.mxu0 0.0
  %1874 = vmatpush2.msra.mxu0 0.0
  %1875 = vmatprep.subr.mxu0 0.0
  %1876 = vmatpush2.msra.mxu0 0.0
  %1877 = vmatprep.subr.mxu0 0.0
  %1878 = vmatpush2.msra.mxu0 0.0
  %1879 = vmatprep.subr.mxu0 0.0
  %1880 = vmatpush2.msra.mxu0 0.0
  %1881 = vmatprep.subr.mxu0 0.0
  %1882 = vmatpush2.msra.mxu0 0.0
  %1883 = vmatprep.subr.mxu0 0.0
  %1884 = vmatpush2.msra.mxu0 0.0
  %1885 = vmatprep.subr.mxu0 0.0
  %1886 = vmatpush2.msra.mxu0 0.0
  %1887 = vmatprep.subr.mxu0 0.0
  %1888 = vmatpush2.msra.mxu0 0.0
  %1889 = vmatprep.subr.mxu0 0.0
  %1890 = vmatpush2.msra.mxu0 0.0
  %1891 = vmatprep.mubr.f32.mxu0 0.0
  %v1892 = vand.u32 %v1421, 4294901760
  %1893 = vmatmul.mubr.f32.gmra.mxu0 %v1892
  %v1894 = vpop.f32.mrf.mxu0
  %v1895 = vadd.f32 %v1821, %v1894
  %v1896 = vpop.f32.mrf.mxu0
  %1897 = vdwg.mxu0
  %v1898 = vmax.f32 %v1895, 0.0
  %1899 = vst [vmem:[%s7] sm:$0x3] %v1898
  // Predicated region
  $region30: #{scoreoverunder_forward.1} parent=0 // pred_check
    _
  $region31: #{scoreoverunder_forward.1} parent=0 // pred_check_branch
    %1901 = sbr.rel (0) target = $region33
  $region32: #{scoreoverunder_forward.1} parent=0 // pred_region
    _
  $region33: #{scoreoverunder_forward.1} parent=0 // pred_fallthru
    _
  // Predicated region
  $region34: #{scoreoverunder_forward.1} parent=0 // pred_check
    _
  $region35: #{scoreoverunder_forward.1} parent=0 // pred_check_branch
    %1903 = sbr.rel (0) target = $region37
  $region36: #{scoreoverunder_forward.1} parent=0 // pred_region
    _
  $region37: #{scoreoverunder_forward.1} parent=0 // pred_fallthru
    _

</llo_original>
